<compile_context>
chip_gen: v7x
topology: tpu7x:2x2x1
jax: 0.10.0
libtpu: 0.0.40
codegen_flags: <defaults>
</compile_context>

<pallas_src>
import numpy as np

import jax
import jax.numpy as jnp
from jax.experimental import pallas as pl
from jax.experimental.pallas import tpu as pltpu

INPUT_SIZE = 16      # program_input feature size
HIDDEN = 32          # LSTM hidden size (4*HIDDEN = 128 -> lane aligned)
NUM_ARMS = 8         # arms per bandit module
HEADW = 128          # lane-padded width of each head (logits / rewards)
OUT_W = 128          # lane-dense packed output row width per node
NODES_PER_STEP = 8   # K: tree nodes processed per grid step


# ----------------------------------------------------------------------------
# Fused Pallas kernel: one grid step == NODES_PER_STEP tree nodes
# ----------------------------------------------------------------------------
def fused_tree_kernel(mid_ref,     # SMEM prefetch: (n_pad,) int32 module ids
                      ctbl_ref,    # SMEM prefetch: (n_pad*MAXC,) int32 child ids (-1 pad)
                      gx_ref,      # VMEM resident: (M, 1, 4H) x @ W_ih + b per module
                      wr_ref,      # VMEM resident: (M, 1, 4H) aggregated-reward column
                      bhead_ref,   # VMEM resident: (M, 1, 2*HEADW) fused head bias (f32)
                      whead_ref,   # VMEM resident: (M, H, 2*HEADW) fused head W (bf16)
                      out_ref,     # (K, OUT_W) packed output rows for this chunk
                      rmem_ref):   # VMEM scratch (1, NODE_PAD): reward memory (lane=node)
    blk = pl.program_id(0)

    @pl.when(blk == 0)
    def _init():
        rmem_ref[...] = jnp.zeros_like(rmem_ref)

    K = out_ref.shape[0]
    node_pad = rmem_ref.shape[1]
    four_h = gx_ref.shape[2]
    H = four_h // 4
    headw = bhead_ref.shape[2] // 2
    max_children = ctbl_ref.shape[0] // mid_ref.shape[0]

    lane = jax.lax.broadcasted_iota(jnp.int32, (1, headw), 1)
    node_lane = jax.lax.broadcasted_iota(jnp.int32, (1, node_pad), 1)

    # Reward memory: 1 load + 1 store per chunk; per-node updates stay in vregs.
    rvec = rmem_ref[...]                                            # (1, NODE_PAD)

    for k in range(K):                                              # static unroll
        node = blk * K + k
        mid = mid_ref[node]                                         # SMEM scalar load
        base = node * max_children

        # ---- aggregate child rewards: torch.mean == masked lane reduction --
        # mask built from O(max_children) scalar-vs-iota compares; -1 pads
        # never match a lane, leaves get cnt == 0 -> agg == 0 (matches ref).
        mask = (node_lane == ctbl_ref[base]).astype(jnp.float32)
        for j in range(1, max_children):
            mask = mask + (node_lane == ctbl_ref[base + j]).astype(jnp.float32)
        cnt = jnp.sum(mask, axis=-1, keepdims=True)                 # (1, 1)
        agg = jnp.where(
            cnt > 0.0,
            jnp.sum(rvec * mask, axis=-1, keepdims=True) / jnp.maximum(cnt, 1.0),
            0.0)                                                    # (1, 1)

        # ---- LSTM cell (h0 = c0 = 0 per forward => recurrent terms are 0) --
        gates = gx_ref[mid] + agg * wr_ref[mid]                     # (1, 4H)
        sig = jax.nn.sigmoid(gates)                                 # one EUP pass
        tnh = jnp.tanh(gates)                                       # one EUP pass
        i_g = sig[:, 0 * H:1 * H]
        g_g = tnh[:, 2 * H:3 * H]
        o_g = sig[:, 3 * H:4 * H]
        # forget gate would multiply c0 == 0 -> contributes exactly zero; omitted.
        c_new = i_g * g_g
        h_new = o_g * jnp.tanh(c_new)                               # (1, H) f32

        # ---- fused arm-logit / arm-reward head: one MXU dot (bf16 W, f32 acc)
        head = (jnp.dot(h_new.astype(whead_ref.dtype), whead_ref[mid],
                        preferred_element_type=jnp.float32)
                + bhead_ref[mid])                                   # (1, 2*HEADW) f32
        logits = head[:, :headw]       # lanes >= NUM_ARMS carry the -1e30 pad bias
        rew = head[:, headw:]          # lanes >= NUM_ARMS are exactly 0

        mx = jnp.max(logits, axis=-1, keepdims=True)
        e = jnp.exp(logits - mx)                                    # pad lanes -> 0
        probs = e / jnp.sum(e, axis=-1, keepdims=True)              # softmax over real arms

        # argmax with first-max tie-break (matches torch.argmax)
        arm = jnp.min(jnp.where(logits == mx, lane, headw), axis=-1, keepdims=True)
        one_hot = (lane == arm).astype(jnp.float32)
        sel = jnp.sum(rew * one_hot, axis=-1, keepdims=True)        # (1, 1)

        # ---- update reward memory (register-level) + emit packed output row
        rvec = jnp.where(node_lane == node, sel, rvec)

        row = probs                                                 # lanes >= NUM_ARMS are 0
        row = jnp.where(lane == NUM_ARMS, sel, row)                 # reward at lane A
        row = jnp.where(lane == NUM_ARMS + 1, arm.astype(jnp.float32), row)  # arm at A+1
        out_ref[pl.ds(k, 1), :] = row                               # static-offset (1,128) store

    rmem_ref[...] = rvec


# ----------------------------------------------------------------------------
# Jitted forward over the fused kernel
# ----------------------------------------------------------------------------
@jax.jit
def _fused_tree_forward(program_input, wx, wr, bias, wa, ba, wq, bq,
                        module_ids, child_tbl):
    M, _, four_h = wx.shape
    H = wa.shape[1]
    A = wa.shape[2]
    n_pad_nodes = module_ids.shape[0]
    n_blocks = n_pad_nodes // NODES_PER_STEP
    node_pad = max(128, ((n_pad_nodes + 127) // 128) * 128)

    # Hoist x @ W_ih + b out of the per-node hot path (constant per forward).
    gx = jnp.einsum('bi,mio->mbo', program_input, wx) + bias        # (M, 1, 4H)

    # Lane-pad and fuse the arm / reward heads into one (H, 256) matrix; bf16
    # weights halve resident VMEM, bias (incl. -1e30 logit pad) stays f32.
    wa_p = jnp.pad(wa, ((0, 0), (0, 0), (0, HEADW - A)))
    wq_p = jnp.pad(wq, ((0, 0), (0, 0), (0, HEADW - A)))
    whead = jnp.concatenate([wa_p, wq_p], axis=-1).astype(jnp.bfloat16)  # (M, H, 2*HEADW)
    ba_p = jnp.pad(ba, ((0, 0), (0, 0), (0, HEADW - A)), constant_values=-1e30)
    bq_p = jnp.pad(bq, ((0, 0), (0, 0), (0, HEADW - A)))
    bhead = jnp.concatenate([ba_p, bq_p], axis=-1)                  # (M, 1, 2*HEADW) f32

    # Explicit scoped-VMEM limit (v5e default is only 16 MiB); resident
    # weights + double buffers + margin, capped well under every gen's VMEM.
    resident_bytes = whead.size * 2 + (gx.size + wr.size + bhead.size) * 4
    vmem_bytes = int(min(48 * 1024 * 1024,
                         max(24 * 1024 * 1024, 4 * resident_bytes + (4 << 20))))

    grid_spec = pltpu.PrefetchScalarGridSpec(
        num_scalar_prefetch=2,        # module_ids, child_tbl -> SMEM
        grid=(n_blocks,),
        in_specs=[
            # Constant block index == full array stays resident in VMEM; the
            # kernel picks the module with a dynamic leading-dim index.
            pl.BlockSpec((M, 1, four_h), lambda nb, mids, ctbl: (0, 0, 0)),      # gx
            pl.BlockSpec((M, 1, four_h), lambda nb, mids, ctbl: (0, 0, 0)),      # wr
            pl.BlockSpec((M, 1, 2 * HEADW), lambda nb, mids, ctbl: (0, 0, 0)),   # bhead
            pl.BlockSpec((M, H, 2 * HEADW), lambda nb, mids, ctbl: (0, 0, 0)),   # whead
        ],
        out_specs=pl.BlockSpec((NODES_PER_STEP, OUT_W), lambda nb, mids, ctbl: (nb, 0)),
        scratch_shapes=[pltpu.VMEM((1, node_pad), jnp.float32)],    # reward memory
    )
    return pl.pallas_call(
        fused_tree_kernel,
        out_shape=jax.ShapeDtypeStruct((n_pad_nodes, OUT_W), jnp.float32),
        grid_spec=grid_spec,
        compiler_params=pltpu.CompilerParams(
            dimension_semantics=("arbitrary",),   # nodes are sequentially dependent
            vmem_limit_bytes=vmem_bytes),
    )(module_ids, child_tbl, gx, wr, bhead, whead)


# ----------------------------------------------------------------------------
# Deterministic parameter construction (xavier-uniform head linears with zero
# biases, matching LSTMAggregateNetwork._init_weights; LSTM weights: torch
# default U(-1/sqrt(H), 1/sqrt(H)), stored transposed as (in_features, 4H)).
# ----------------------------------------------------------------------------
def _xavier(key, shape):
    fan_in, fan_out = shape
    lim = jnp.sqrt(6.0 / (fan_in + fan_out))
    return jax.random.uniform(key, shape, jnp.float32, -lim, lim)


def make_module_params(key):
    ks = jax.random.split(key, 5)
    lim = 1.0 / jnp.sqrt(HIDDEN)
    wx = jax.random.uniform(ks[0], (INPUT_SIZE, 4 * HIDDEN), jnp.float32, -lim, lim)
    wr = jax.random.uniform(ks[1], (1, 4 * HIDDEN), jnp.float32, -lim, lim)
    wh = jax.random.uniform(ks[2], (HIDDEN, 4 * HIDDEN), jnp.float32, -lim, lim)
    b = jnp.zeros((1, 4 * HIDDEN), jnp.float32)
    wa = _xavier(ks[3], (HIDDEN, NUM_ARMS))
    ba = jnp.zeros((1, NUM_ARMS), jnp.float32)
    wq = _xavier(ks[4], (HIDDEN, NUM_ARMS))
    bq = jnp.zeros((1, NUM_ARMS), jnp.float32)
    return {"wx": wx, "wr": wr, "wh": wh, "b": b,
            "wa": wa, "ba": ba, "wq": wq, "bq": bq}


# ----------------------------------------------------------------------------
# LSTMAggregateNetwork.forward: host glue builds static node/child tables,
# then the whole tree walk runs inside the single fused kernel.
# ----------------------------------------------------------------------------
def lstm_aggregate_forward(tree, program_input, module_dict):
    names = list(module_dict.keys())
    name_to_idx = {nm: i for i, nm in enumerate(names)}
    n_nodes = len(tree)
    K = NODES_PER_STEP
    n_pad = ((n_nodes + K - 1) // K) * K
    max_children = max([1] + [len(children) for _, children in tree])

    def stack(field):
        return jnp.stack([module_dict[nm][field] for nm in names])

    wx = stack("wx")   # (M, IN, 4H)
    wr = stack("wr")   # (M, 1, 4H)
    b = stack("b")     # (M, 1, 4H)
    wa = stack("wa")   # (M, H, A)
    ba = stack("ba")   # (M, 1, A)
    wq = stack("wq")   # (M, H, A)
    bq = stack("bq")   # (M, 1, A)
    # NOTE: the recurrent weights ("wh") exist in each module but contribute
    # exactly zero here (init_hidden() == zeros, each node runs once per
    # forward), so they are not shipped to the kernel.

    # Scalar tables (1-D -> SMEM-friendly padding): module id per node and a
    # flat child-index table padded with -1 (no quadratic child mask in HBM).
    mids_np = np.zeros((n_pad,), np.int32)
    for i, (fn, _) in enumerate(tree):
        mids_np[i] = name_to_idx[fn]
    ctbl_np = np.full((n_pad * max_children,), -1, np.int32)
    for i, (_, children) in enumerate(tree):
        for j, ch in enumerate(children):
            ctbl_np[i * max_children + j] = ch
    module_ids = jnp.asarray(mids_np)
    child_tbl = jnp.asarray(ctbl_np)

    slab = _fused_tree_forward(program_input, wx, wr, b, wa, ba, wq, bq,
                               module_ids, child_tbl)               # (n_pad, 128)

    reward_memory = {}
    outputs = {}
    for i, (module_function, _) in enumerate(tree):
        row = slab[i]
        selected_reward = row[NUM_ARMS].reshape(1, 1)
        arm_probs = row[:NUM_ARMS].reshape(1, NUM_ARMS)
        selected_arm = row[NUM_ARMS + 1].astype(jnp.int32).reshape(1, 1)
        outputs[i] = (module_function, selected_reward, arm_probs, selected_arm)
        reward_memory[i] = selected_reward
    return reward_memory, outputs


if __name__ == "__main__":
    key = jax.random.PRNGKey(0)
    k_in, k_a, k_b, k_c = jax.random.split(key, 4)

    program_input = jax.random.normal(k_in, (1, INPUT_SIZE), jnp.float32)

    module_dict = {
        "leaf_a": make_module_params(k_a),
        "leaf_b": make_module_params(k_b),
        "combine": make_module_params(k_c),
    }
    # tree: list of (module_function, children_indices)
    tree = [
        ("leaf_a", []),
        ("leaf_b", []),
        ("combine", [0, 1]),
    ]

    reward_memory, outputs = lstm_aggregate_forward(tree, program_input, module_dict)

    # block on everything
    for i in sorted(reward_memory):
        jax.block_until_ready(reward_memory[i])
        _, r, p, a = outputs[i]
        jax.block_until_ready((r, p, a))

    print("KERNEL_OK")
</pallas_src>

<mosaic_0001>
module attributes {stable_mosaic.version = 11 : i64} {
  func.func @fused_tree_kernel(%arg0: i32, %arg1: memref<8xi32, #tpu.memory_space<smem>>, %arg2: memref<16xi32, #tpu.memory_space<smem>>, %arg3: memref<3x1x128xf32, #tpu.memory_space<vmem>>, %arg4: memref<3x1x128xf32, #tpu.memory_space<vmem>>, %arg5: memref<3x1x256xf32, #tpu.memory_space<vmem>>, %arg6: memref<3x32x256xbf16, #tpu.memory_space<vmem>>, %arg7: memref<8x128xf32, #tpu.memory_space<vmem>>, %arg8: memref<1x128xf32, #tpu.memory_space<vmem>>) attributes {dimension_semantics = [#tpu.dimension_semantics<arbitrary>], iteration_bounds = array<i64: 1>, scalar_prefetch = 2 : i64, scratch_operands = 1 : i64, tpu.core_type = #tpu.core_type<tc>, window_params = [{pipeline_mode = #tpu.pipeline_mode<synchronous>, transform_indices = @transform_0, window_bounds = array<i64: 3, 1, 128>}, {pipeline_mode = #tpu.pipeline_mode<synchronous>, transform_indices = @transform_1, window_bounds = array<i64: 3, 1, 128>}, {pipeline_mode = #tpu.pipeline_mode<synchronous>, transform_indices = @transform_2, window_bounds = array<i64: 3, 1, 256>}, {pipeline_mode = #tpu.pipeline_mode<synchronous>, transform_indices = @transform_3, window_bounds = array<i64: 3, 32, 256>}, {transform_indices = @transform_4, window_bounds = array<i64: 8, 128>}]} {
    %c0_i32 = arith.constant 0 : i32
    %0 = arith.cmpi eq, %arg0, %c0_i32 : i32
    %1 = arith.extui %0 : i1 to i32
    %c0_i32_0 = arith.constant 0 : i32
    %2 = arith.cmpi ne, %1, %c0_i32_0 : i32
    scf.if %2 {
      %cst_210 = arith.constant 0.000000e+00 : f32
      %823 = vector.broadcast %cst_210 : f32 to vector<1x128xf32>
      %c0_211 = arith.constant 0 : index
      %c0_212 = arith.constant 0 : index
      %824 = vector.load %arg8[%c0_211, %c0_212] : memref<1x128xf32, #tpu.memory_space<vmem>>, vector<1x128xf32>
      tpu.vector_store %arg8[%c0_211, %c0_212], %823 {strides = array<i32>} : memref<1x128xf32, #tpu.memory_space<vmem>>, vector<1x128xf32>,
    } else {
    }
    %3 = tpu.iota {dimensions = array<i32: 1>} : vector<1x128xi32>
    %4 = tpu.iota {dimensions = array<i32: 1>} : vector<1x128xi32>
    %c0 = arith.constant 0 : index
    %c0_1 = arith.constant 0 : index
    %5 = vector.load %arg8[%c0, %c0_1] : memref<1x128xf32, #tpu.memory_space<vmem>>, vector<1x128xf32>
    %c8_i32 = arith.constant 8 : i32
    %6 = arith.muli %arg0, %c8_i32 : i32
    %c0_i32_2 = arith.constant 0 : i32
    %7 = arith.addi %6, %c0_i32_2 : i32
    %8 = arith.index_cast %7 : i32 to index
    %9 = memref.load %arg1[%8] : memref<8xi32, #tpu.memory_space<smem>>
    %c2_i32 = arith.constant 2 : i32
    %10 = arith.muli %7, %c2_i32 : i32
    %11 = arith.index_cast %10 : i32 to index
    %12 = memref.load %arg2[%11] : memref<16xi32, #tpu.memory_space<smem>>
    %13 = vector.broadcast %12 : i32 to vector<1x128xi32>
    %14 = arith.cmpi eq, %4, %13 : vector<1x128xi32>
    %15 = arith.extui %14 : vector<1x128xi1> to vector<1x128xi32>
    %16 = arith.sitofp %15 : vector<1x128xi32> to vector<1x128xf32>
    %c1_i32 = arith.constant 1 : i32
    %17 = arith.addi %10, %c1_i32 : i32
    %18 = arith.index_cast %17 : i32 to index
    %19 = memref.load %arg2[%18] : memref<16xi32, #tpu.memory_space<smem>>
    %20 = vector.broadcast %19 : i32 to vector<1x128xi32>
    %21 = arith.cmpi eq, %4, %20 : vector<1x128xi32>
    %22 = arith.extui %21 : vector<1x128xi1> to vector<1x128xi32>
    %23 = arith.sitofp %22 : vector<1x128xi32> to vector<1x128xf32>
    %24 = arith.addf %16, %23 : vector<1x128xf32>
    %cst = arith.constant dense<0.000000e+00> : vector<1xf32>
    %25 = vector.multi_reduction <add>, %24, %cst [1] : vector<1x128xf32> to vector<1xf32>
    %26 = vector.shape_cast %25 : vector<1xf32> to vector<1x1xf32>
    %cst_3 = arith.constant 0.000000e+00 : f32
    %27 = vector.broadcast %cst_3 : f32 to vector<1x1xf32>
    %28 = arith.cmpf ogt, %26, %27 : vector<1x1xf32>
    %29 = arith.mulf %5, %24 : vector<1x128xf32>
    %cst_4 = arith.constant dense<0.000000e+00> : vector<1xf32>
    %30 = vector.multi_reduction <add>, %29, %cst_4 [1] : vector<1x128xf32> to vector<1xf32>
    %31 = vector.shape_cast %30 : vector<1xf32> to vector<1x1xf32>
    %cst_5 = arith.constant 1.000000e+00 : f32
    %32 = vector.broadcast %cst_5 : f32 to vector<1x1xf32>
    %33 = arith.maximumf %26, %32 : vector<1x1xf32>
    %34 = arith.divf %31, %33 : vector<1x1xf32>
    %cst_6 = arith.constant 0.000000e+00 : f32
    %35 = vector.broadcast %cst_6 : f32 to vector<1x1xf32>
    %36 = arith.select %28, %34, %35 : vector<1x1xi1>, vector<1x1xf32>
    %37 = arith.index_cast %9 : i32 to index
    %c0_7 = arith.constant 0 : index
    %c0_8 = arith.constant 0 : index
    %38 = vector.load %arg3[%37, %c0_7, %c0_8] : memref<3x1x128xf32, #tpu.memory_space<vmem>>, vector<1x1x128xf32>
    %39 = vector.shape_cast %38 : vector<1x1x128xf32> to vector<1x128xf32>
    %40 = arith.index_cast %9 : i32 to index
    %c0_9 = arith.constant 0 : index
    %c0_10 = arith.constant 0 : index
    %41 = vector.load %arg4[%40, %c0_9, %c0_10] : memref<3x1x128xf32, #tpu.memory_space<vmem>>, vector<1x1x128xf32>
    %42 = vector.shape_cast %41 : vector<1x1x128xf32> to vector<1x128xf32>
    %43 = vector.broadcast %36 : vector<1x1xf32> to vector<1x128xf32>
    %44 = arith.mulf %43, %42 : vector<1x128xf32>
    %45 = arith.addf %39, %44 : vector<1x128xf32>
    %46 = arith.negf %45 : vector<1x128xf32>
    %47 = math.exp %46 : vector<1x128xf32>
    %cst_11 = arith.constant 1.000000e+00 : f32
    %48 = vector.broadcast %cst_11 : f32 to vector<1x128xf32>
    %49 = arith.addf %48, %47 : vector<1x128xf32>
    %50 = arith.divf %48, %49 : vector<1x128xf32>
    %51 = math.tanh %45 : vector<1x128xf32>
    %52 = vector.extract_strided_slice %50 {offsets = [0, 0], sizes = [1, 32], strides = [1, 1]} : vector<1x128xf32> to vector<1x32xf32>
    %53 = vector.extract_strided_slice %51 {offsets = [0, 64], sizes = [1, 32], strides = [1, 1]} : vector<1x128xf32> to vector<1x32xf32>
    %54 = vector.extract_strided_slice %50 {offsets = [0, 96], sizes = [1, 32], strides = [1, 1]} : vector<1x128xf32> to vector<1x32xf32>
    %55 = arith.mulf %52, %53 : vector<1x32xf32>
    %56 = math.tanh %55 : vector<1x32xf32>
    %57 = arith.mulf %54, %56 : vector<1x32xf32>
    %58 = arith.truncf %57 : vector<1x32xf32> to vector<1x32xbf16>
    %59 = arith.index_cast %9 : i32 to index
    %c0_12 = arith.constant 0 : index
    %c0_13 = arith.constant 0 : index
    %60 = vector.load %arg6[%59, %c0_12, %c0_13] : memref<3x32x256xbf16, #tpu.memory_space<vmem>>, vector<1x32x256xbf16>
    %61 = vector.shape_cast %60 : vector<1x32x256xbf16> to vector<32x256xbf16>
    %cst_14 = arith.constant dense<0.000000e+00> : vector<1x256xf32>
    %62 = tpu.matmul %58, %61, %cst_14 {dimension_numbers = #tpu.dot_dimension_numbers<[1], [0], [0], [1], [0, 0, 1, 1], [], []>} : vector<1x32xbf16>, vector<32x256xbf16>, vector<1x256xf32> -> vector<1x256xf32>
    %63 = arith.index_cast %9 : i32 to index
    %c0_15 = arith.constant 0 : index
    %c0_16 = arith.constant 0 : index
    %64 = vector.load %arg5[%63, %c0_15, %c0_16] : memref<3x1x256xf32, #tpu.memory_space<vmem>>, vector<1x1x256xf32>
    %65 = vector.shape_cast %64 : vector<1x1x256xf32> to vector<1x256xf32>
    %66 = arith.addf %62, %65 : vector<1x256xf32>
    %67 = vector.extract_strided_slice %66 {offsets = [0, 0], sizes = [1, 128], strides = [1, 1]} : vector<1x256xf32> to vector<1x128xf32>
    %68 = vector.extract_strided_slice %66 {offsets = [0, 128], sizes = [1, 128], strides = [1, 1]} : vector<1x256xf32> to vector<1x128xf32>
    %cst_17 = arith.constant dense<0xFF800000> : vector<1xf32>
    %69 = vector.multi_reduction <maximumf>, %67, %cst_17 [1] : vector<1x128xf32> to vector<1xf32>
    %70 = vector.shape_cast %69 : vector<1xf32> to vector<1x1xf32>
    %71 = vector.broadcast %70 : vector<1x1xf32> to vector<1x128xf32>
    %72 = arith.subf %67, %71 : vector<1x128xf32>
    %73 = math.exp %72 : vector<1x128xf32>
    %cst_18 = arith.constant dense<0.000000e+00> : vector<1xf32>
    %74 = vector.multi_reduction <add>, %73, %cst_18 [1] : vector<1x128xf32> to vector<1xf32>
    %75 = vector.shape_cast %74 : vector<1xf32> to vector<1x1xf32>
    %76 = vector.broadcast %75 : vector<1x1xf32> to vector<1x128xf32>
    %77 = arith.divf %73, %76 : vector<1x128xf32>
    %78 = vector.broadcast %70 : vector<1x1xf32> to vector<1x128xf32>
    %79 = arith.cmpf oeq, %67, %78 : vector<1x128xf32>
    %c128_i32 = arith.constant 128 : i32
    %80 = vector.broadcast %c128_i32 : i32 to vector<1x128xi32>
    %81 = arith.select %79, %3, %80 : vector<1x128xi1>, vector<1x128xi32>
    %cst_19 = arith.constant dense<2147483647> : vector<1xi32>
    %82 = vector.multi_reduction <minsi>, %81, %cst_19 [1] : vector<1x128xi32> to vector<1xi32>
    %83 = vector.shape_cast %82 : vector<1xi32> to vector<1x1xi32>
    %84 = vector.broadcast %83 : vector<1x1xi32> to vector<1x128xi32>
    %85 = arith.cmpi eq, %3, %84 : vector<1x128xi32>
    %86 = arith.extui %85 : vector<1x128xi1> to vector<1x128xi32>
    %87 = arith.sitofp %86 : vector<1x128xi32> to vector<1x128xf32>
    %88 = arith.mulf %68, %87 : vector<1x128xf32>
    %cst_20 = arith.constant dense<0.000000e+00> : vector<1xf32>
    %89 = vector.multi_reduction <add>, %88, %cst_20 [1] : vector<1x128xf32> to vector<1xf32>
    %90 = vector.shape_cast %89 : vector<1xf32> to vector<1x1xf32>
    %91 = vector.broadcast %7 : i32 to vector<1x128xi32>
    %92 = arith.cmpi eq, %4, %91 : vector<1x128xi32>
    %93 = vector.shape_cast %90 : vector<1x1xf32> to vector<1x1xf32>
    %94 = vector.broadcast %93 : vector<1x1xf32> to vector<1x128xf32>
    %95 = arith.select %92, %94, %5 : vector<1x128xi1>, vector<1x128xf32>
    %c8_i32_21 = arith.constant 8 : i32
    %96 = vector.broadcast %c8_i32_21 : i32 to vector<1x128xi32>
    %97 = arith.cmpi eq, %3, %96 : vector<1x128xi32>
    %98 = vector.shape_cast %90 : vector<1x1xf32> to vector<1x1xf32>
    %99 = vector.broadcast %98 : vector<1x1xf32> to vector<1x128xf32>
    %100 = arith.select %97, %99, %77 : vector<1x128xi1>, vector<1x128xf32>
    %c9_i32 = arith.constant 9 : i32
    %101 = vector.broadcast %c9_i32 : i32 to vector<1x128xi32>
    %102 = arith.cmpi eq, %3, %101 : vector<1x128xi32>
    %103 = arith.sitofp %83 : vector<1x1xi32> to vector<1x1xf32>
    %104 = vector.shape_cast %103 : vector<1x1xf32> to vector<1x1xf32>
    %105 = vector.broadcast %104 : vector<1x1xf32> to vector<1x128xf32>
    %106 = arith.select %102, %105, %100 : vector<1x128xi1>, vector<1x128xf32>
    %c0_22 = arith.constant 0 : index
    %c0_23 = arith.constant 0 : index
    %107 = vector.load %arg7[%c0_22, %c0_23] : memref<8x128xf32, #tpu.memory_space<vmem>>, vector<1x128xf32>
    tpu.vector_store %arg7[%c0_22, %c0_23], %106 {strides = array<i32>} : memref<8x128xf32, #tpu.memory_space<vmem>>, vector<1x128xf32>,
    %c8_i32_24 = arith.constant 8 : i32
    %108 = arith.muli %arg0, %c8_i32_24 : i32
    %c1_i32_25 = arith.constant 1 : i32
    %109 = arith.addi %108, %c1_i32_25 : i32
    %110 = arith.index_cast %109 : i32 to index
    %111 = memref.load %arg1[%110] : memref<8xi32, #tpu.memory_space<smem>>
    %c2_i32_26 = arith.constant 2 : i32
    %112 = arith.muli %109, %c2_i32_26 : i32
    %113 = arith.index_cast %112 : i32 to index
    %114 = memref.load %arg2[%113] : memref<16xi32, #tpu.memory_space<smem>>
    %115 = vector.broadcast %114 : i32 to vector<1x128xi32>
    %116 = arith.cmpi eq, %4, %115 : vector<1x128xi32>
    %117 = arith.extui %116 : vector<1x128xi1> to vector<1x128xi32>
    %118 = arith.sitofp %117 : vector<1x128xi32> to vector<1x128xf32>
    %c1_i32_27 = arith.constant 1 : i32
    %119 = arith.addi %112, %c1_i32_27 : i32
    %120 = arith.index_cast %119 : i32 to index
    %121 = memref.load %arg2[%120] : memref<16xi32, #tpu.memory_space<smem>>
    %122 = vector.broadcast %121 : i32 to vector<1x128xi32>
    %123 = arith.cmpi eq, %4, %122 : vector<1x128xi32>
    %124 = arith.extui %123 : vector<1x128xi1> to vector<1x128xi32>
    %125 = arith.sitofp %124 : vector<1x128xi32> to vector<1x128xf32>
    %126 = arith.addf %118, %125 : vector<1x128xf32>
    %cst_28 = arith.constant dense<0.000000e+00> : vector<1xf32>
    %127 = vector.multi_reduction <add>, %126, %cst_28 [1] : vector<1x128xf32> to vector<1xf32>
    %128 = vector.shape_cast %127 : vector<1xf32> to vector<1x1xf32>
    %cst_29 = arith.constant 0.000000e+00 : f32
    %129 = vector.broadcast %cst_29 : f32 to vector<1x1xf32>
    %130 = arith.cmpf ogt, %128, %129 : vector<1x1xf32>
    %131 = arith.mulf %95, %126 : vector<1x128xf32>
    %cst_30 = arith.constant dense<0.000000e+00> : vector<1xf32>
    %132 = vector.multi_reduction <add>, %131, %cst_30 [1] : vector<1x128xf32> to vector<1xf32>
    %133 = vector.shape_cast %132 : vector<1xf32> to vector<1x1xf32>
    %cst_31 = arith.constant 1.000000e+00 : f32
    %134 = vector.broadcast %cst_31 : f32 to vector<1x1xf32>
    %135 = arith.maximumf %128, %134 : vector<1x1xf32>
    %136 = arith.divf %133, %135 : vector<1x1xf32>
    %cst_32 = arith.constant 0.000000e+00 : f32
    %137 = vector.broadcast %cst_32 : f32 to vector<1x1xf32>
    %138 = arith.select %130, %136, %137 : vector<1x1xi1>, vector<1x1xf32>
    %139 = arith.index_cast %111 : i32 to index
    %c0_33 = arith.constant 0 : index
    %c0_34 = arith.constant 0 : index
    %140 = vector.load %arg3[%139, %c0_33, %c0_34] : memref<3x1x128xf32, #tpu.memory_space<vmem>>, vector<1x1x128xf32>
    %141 = vector.shape_cast %140 : vector<1x1x128xf32> to vector<1x128xf32>
    %142 = arith.index_cast %111 : i32 to index
    %c0_35 = arith.constant 0 : index
    %c0_36 = arith.constant 0 : index
    %143 = vector.load %arg4[%142, %c0_35, %c0_36] : memref<3x1x128xf32, #tpu.memory_space<vmem>>, vector<1x1x128xf32>
    %144 = vector.shape_cast %143 : vector<1x1x128xf32> to vector<1x128xf32>
    %145 = vector.broadcast %138 : vector<1x1xf32> to vector<1x128xf32>
    %146 = arith.mulf %145, %144 : vector<1x128xf32>
    %147 = arith.addf %141, %146 : vector<1x128xf32>
    %148 = arith.negf %147 : vector<1x128xf32>
    %149 = math.exp %148 : vector<1x128xf32>
    %cst_37 = arith.constant 1.000000e+00 : f32
    %150 = vector.broadcast %cst_37 : f32 to vector<1x128xf32>
    %151 = arith.addf %150, %149 : vector<1x128xf32>
    %152 = arith.divf %150, %151 : vector<1x128xf32>
    %153 = math.tanh %147 : vector<1x128xf32>
    %154 = vector.extract_strided_slice %152 {offsets = [0, 0], sizes = [1, 32], strides = [1, 1]} : vector<1x128xf32> to vector<1x32xf32>
    %155 = vector.extract_strided_slice %153 {offsets = [0, 64], sizes = [1, 32], strides = [1, 1]} : vector<1x128xf32> to vector<1x32xf32>
    %156 = vector.extract_strided_slice %152 {offsets = [0, 96], sizes = [1, 32], strides = [1, 1]} : vector<1x128xf32> to vector<1x32xf32>
    %157 = arith.mulf %154, %155 : vector<1x32xf32>
    %158 = math.tanh %157 : vector<1x32xf32>
    %159 = arith.mulf %156, %158 : vector<1x32xf32>
    %160 = arith.truncf %159 : vector<1x32xf32> to vector<1x32xbf16>
    %161 = arith.index_cast %111 : i32 to index
    %c0_38 = arith.constant 0 : index
    %c0_39 = arith.constant 0 : index
    %162 = vector.load %arg6[%161, %c0_38, %c0_39] : memref<3x32x256xbf16, #tpu.memory_space<vmem>>, vector<1x32x256xbf16>
    %163 = vector.shape_cast %162 : vector<1x32x256xbf16> to vector<32x256xbf16>
    %cst_40 = arith.constant dense<0.000000e+00> : vector<1x256xf32>
    %164 = tpu.matmul %160, %163, %cst_40 {dimension_numbers = #tpu.dot_dimension_numbers<[1], [0], [0], [1], [0, 0, 1, 1], [], []>} : vector<1x32xbf16>, vector<32x256xbf16>, vector<1x256xf32> -> vector<1x256xf32>
    %165 = arith.index_cast %111 : i32 to index
    %c0_41 = arith.constant 0 : index
    %c0_42 = arith.constant 0 : index
    %166 = vector.load %arg5[%165, %c0_41, %c0_42] : memref<3x1x256xf32, #tpu.memory_space<vmem>>, vector<1x1x256xf32>
    %167 = vector.shape_cast %166 : vector<1x1x256xf32> to vector<1x256xf32>
    %168 = arith.addf %164, %167 : vector<1x256xf32>
    %169 = vector.extract_strided_slice %168 {offsets = [0, 0], sizes = [1, 128], strides = [1, 1]} : vector<1x256xf32> to vector<1x128xf32>
    %170 = vector.extract_strided_slice %168 {offsets = [0, 128], sizes = [1, 128], strides = [1, 1]} : vector<1x256xf32> to vector<1x128xf32>
    %cst_43 = arith.constant dense<0xFF800000> : vector<1xf32>
    %171 = vector.multi_reduction <maximumf>, %169, %cst_43 [1] : vector<1x128xf32> to vector<1xf32>
    %172 = vector.shape_cast %171 : vector<1xf32> to vector<1x1xf32>
    %173 = vector.broadcast %172 : vector<1x1xf32> to vector<1x128xf32>
    %174 = arith.subf %169, %173 : vector<1x128xf32>
    %175 = math.exp %174 : vector<1x128xf32>
    %cst_44 = arith.constant dense<0.000000e+00> : vector<1xf32>
    %176 = vector.multi_reduction <add>, %175, %cst_44 [1] : vector<1x128xf32> to vector<1xf32>
    %177 = vector.shape_cast %176 : vector<1xf32> to vector<1x1xf32>
    %178 = vector.broadcast %177 : vector<1x1xf32> to vector<1x128xf32>
    %179 = arith.divf %175, %178 : vector<1x128xf32>
    %180 = vector.broadcast %172 : vector<1x1xf32> to vector<1x128xf32>
    %181 = arith.cmpf oeq, %169, %180 : vector<1x128xf32>
    %c128_i32_45 = arith.constant 128 : i32
    %182 = vector.broadcast %c128_i32_45 : i32 to vector<1x128xi32>
    %183 = arith.select %181, %3, %182 : vector<1x128xi1>, vector<1x128xi32>
    %cst_46 = arith.constant dense<2147483647> : vector<1xi32>
    %184 = vector.multi_reduction <minsi>, %183, %cst_46 [1] : vector<1x128xi32> to vector<1xi32>
    %185 = vector.shape_cast %184 : vector<1xi32> to vector<1x1xi32>
    %186 = vector.broadcast %185 : vector<1x1xi32> to vector<1x128xi32>
    %187 = arith.cmpi eq, %3, %186 : vector<1x128xi32>
    %188 = arith.extui %187 : vector<1x128xi1> to vector<1x128xi32>
    %189 = arith.sitofp %188 : vector<1x128xi32> to vector<1x128xf32>
    %190 = arith.mulf %170, %189 : vector<1x128xf32>
    %cst_47 = arith.constant dense<0.000000e+00> : vector<1xf32>
    %191 = vector.multi_reduction <add>, %190, %cst_47 [1] : vector<1x128xf32> to vector<1xf32>
    %192 = vector.shape_cast %191 : vector<1xf32> to vector<1x1xf32>
    %193 = vector.broadcast %109 : i32 to vector<1x128xi32>
    %194 = arith.cmpi eq, %4, %193 : vector<1x128xi32>
    %195 = vector.shape_cast %192 : vector<1x1xf32> to vector<1x1xf32>
    %196 = vector.broadcast %195 : vector<1x1xf32> to vector<1x128xf32>
    %197 = arith.select %194, %196, %95 : vector<1x128xi1>, vector<1x128xf32>
    %c8_i32_48 = arith.constant 8 : i32
    %198 = vector.broadcast %c8_i32_48 : i32 to vector<1x128xi32>
    %199 = arith.cmpi eq, %3, %198 : vector<1x128xi32>
    %200 = vector.shape_cast %192 : vector<1x1xf32> to vector<1x1xf32>
    %201 = vector.broadcast %200 : vector<1x1xf32> to vector<1x128xf32>
    %202 = arith.select %199, %201, %179 : vector<1x128xi1>, vector<1x128xf32>
    %c9_i32_49 = arith.constant 9 : i32
    %203 = vector.broadcast %c9_i32_49 : i32 to vector<1x128xi32>
    %204 = arith.cmpi eq, %3, %203 : vector<1x128xi32>
    %205 = arith.sitofp %185 : vector<1x1xi32> to vector<1x1xf32>
    %206 = vector.shape_cast %205 : vector<1x1xf32> to vector<1x1xf32>
    %207 = vector.broadcast %206 : vector<1x1xf32> to vector<1x128xf32>
    %208 = arith.select %204, %207, %202 : vector<1x128xi1>, vector<1x128xf32>
    %c1 = arith.constant 1 : index
    %c0_50 = arith.constant 0 : index
    %209 = vector.load %arg7[%c1, %c0_50] : memref<8x128xf32, #tpu.memory_space<vmem>>, vector<1x128xf32>
    tpu.vector_store %arg7[%c1, %c0_50], %208 {strides = array<i32>} : memref<8x128xf32, #tpu.memory_space<vmem>>, vector<1x128xf32>,
    %c8_i32_51 = arith.constant 8 : i32
    %210 = arith.muli %arg0, %c8_i32_51 : i32
    %c2_i32_52 = arith.constant 2 : i32
    %211 = arith.addi %210, %c2_i32_52 : i32
    %212 = arith.index_cast %211 : i32 to index
    %213 = memref.load %arg1[%212] : memref<8xi32, #tpu.memory_space<smem>>
    %c2_i32_53 = arith.constant 2 : i32
    %214 = arith.muli %211, %c2_i32_53 : i32
    %215 = arith.index_cast %214 : i32 to index
    %216 = memref.load %arg2[%215] : memref<16xi32, #tpu.memory_space<smem>>
    %217 = vector.broadcast %216 : i32 to vector<1x128xi32>
    %218 = arith.cmpi eq, %4, %217 : vector<1x128xi32>
    %219 = arith.extui %218 : vector<1x128xi1> to vector<1x128xi32>
    %220 = arith.sitofp %219 : vector<1x128xi32> to vector<1x128xf32>
    %c1_i32_54 = arith.constant 1 : i32
    %221 = arith.addi %214, %c1_i32_54 : i32
    %222 = arith.index_cast %221 : i32 to index
    %223 = memref.load %arg2[%222] : memref<16xi32, #tpu.memory_space<smem>>
    %224 = vector.broadcast %223 : i32 to vector<1x128xi32>
    %225 = arith.cmpi eq, %4, %224 : vector<1x128xi32>
    %226 = arith.extui %225 : vector<1x128xi1> to vector<1x128xi32>
    %227 = arith.sitofp %226 : vector<1x128xi32> to vector<1x128xf32>
    %228 = arith.addf %220, %227 : vector<1x128xf32>
    %cst_55 = arith.constant dense<0.000000e+00> : vector<1xf32>
    %229 = vector.multi_reduction <add>, %228, %cst_55 [1] : vector<1x128xf32> to vector<1xf32>
    %230 = vector.shape_cast %229 : vector<1xf32> to vector<1x1xf32>
    %cst_56 = arith.constant 0.000000e+00 : f32
    %231 = vector.broadcast %cst_56 : f32 to vector<1x1xf32>
    %232 = arith.cmpf ogt, %230, %231 : vector<1x1xf32>
    %233 = arith.mulf %197, %228 : vector<1x128xf32>
    %cst_57 = arith.constant dense<0.000000e+00> : vector<1xf32>
    %234 = vector.multi_reduction <add>, %233, %cst_57 [1] : vector<1x128xf32> to vector<1xf32>
    %235 = vector.shape_cast %234 : vector<1xf32> to vector<1x1xf32>
    %cst_58 = arith.constant 1.000000e+00 : f32
    %236 = vector.broadcast %cst_58 : f32 to vector<1x1xf32>
    %237 = arith.maximumf %230, %236 : vector<1x1xf32>
    %238 = arith.divf %235, %237 : vector<1x1xf32>
    %cst_59 = arith.constant 0.000000e+00 : f32
    %239 = vector.broadcast %cst_59 : f32 to vector<1x1xf32>
    %240 = arith.select %232, %238, %239 : vector<1x1xi1>, vector<1x1xf32>
    %241 = arith.index_cast %213 : i32 to index
    %c0_60 = arith.constant 0 : index
    %c0_61 = arith.constant 0 : index
    %242 = vector.load %arg3[%241, %c0_60, %c0_61] : memref<3x1x128xf32, #tpu.memory_space<vmem>>, vector<1x1x128xf32>
    %243 = vector.shape_cast %242 : vector<1x1x128xf32> to vector<1x128xf32>
    %244 = arith.index_cast %213 : i32 to index
    %c0_62 = arith.constant 0 : index
    %c0_63 = arith.constant 0 : index
    %245 = vector.load %arg4[%244, %c0_62, %c0_63] : memref<3x1x128xf32, #tpu.memory_space<vmem>>, vector<1x1x128xf32>
    %246 = vector.shape_cast %245 : vector<1x1x128xf32> to vector<1x128xf32>
    %247 = vector.broadcast %240 : vector<1x1xf32> to vector<1x128xf32>
    %248 = arith.mulf %247, %246 : vector<1x128xf32>
    %249 = arith.addf %243, %248 : vector<1x128xf32>
    %250 = arith.negf %249 : vector<1x128xf32>
    %251 = math.exp %250 : vector<1x128xf32>
    %cst_64 = arith.constant 1.000000e+00 : f32
    %252 = vector.broadcast %cst_64 : f32 to vector<1x128xf32>
    %253 = arith.addf %252, %251 : vector<1x128xf32>
    %254 = arith.divf %252, %253 : vector<1x128xf32>
    %255 = math.tanh %249 : vector<1x128xf32>
    %256 = vector.extract_strided_slice %254 {offsets = [0, 0], sizes = [1, 32], strides = [1, 1]} : vector<1x128xf32> to vector<1x32xf32>
    %257 = vector.extract_strided_slice %255 {offsets = [0, 64], sizes = [1, 32], strides = [1, 1]} : vector<1x128xf32> to vector<1x32xf32>
    %258 = vector.extract_strided_slice %254 {offsets = [0, 96], sizes = [1, 32], strides = [1, 1]} : vector<1x128xf32> to vector<1x32xf32>
    %259 = arith.mulf %256, %257 : vector<1x32xf32>
    %260 = math.tanh %259 : vector<1x32xf32>
    %261 = arith.mulf %258, %260 : vector<1x32xf32>
    %262 = arith.truncf %261 : vector<1x32xf32> to vector<1x32xbf16>
    %263 = arith.index_cast %213 : i32 to index
    %c0_65 = arith.constant 0 : index
    %c0_66 = arith.constant 0 : index
    %264 = vector.load %arg6[%263, %c0_65, %c0_66] : memref<3x32x256xbf16, #tpu.memory_space<vmem>>, vector<1x32x256xbf16>
    %265 = vector.shape_cast %264 : vector<1x32x256xbf16> to vector<32x256xbf16>
    %cst_67 = arith.constant dense<0.000000e+00> : vector<1x256xf32>
    %266 = tpu.matmul %262, %265, %cst_67 {dimension_numbers = #tpu.dot_dimension_numbers<[1], [0], [0], [1], [0, 0, 1, 1], [], []>} : vector<1x32xbf16>, vector<32x256xbf16>, vector<1x256xf32> -> vector<1x256xf32>
    %267 = arith.index_cast %213 : i32 to index
    %c0_68 = arith.constant 0 : index
    %c0_69 = arith.constant 0 : index
    %268 = vector.load %arg5[%267, %c0_68, %c0_69] : memref<3x1x256xf32, #tpu.memory_space<vmem>>, vector<1x1x256xf32>
    %269 = vector.shape_cast %268 : vector<1x1x256xf32> to vector<1x256xf32>
    %270 = arith.addf %266, %269 : vector<1x256xf32>
    %271 = vector.extract_strided_slice %270 {offsets = [0, 0], sizes = [1, 128], strides = [1, 1]} : vector<1x256xf32> to vector<1x128xf32>
    %272 = vector.extract_strided_slice %270 {offsets = [0, 128], sizes = [1, 128], strides = [1, 1]} : vector<1x256xf32> to vector<1x128xf32>
    %cst_70 = arith.constant dense<0xFF800000> : vector<1xf32>
    %273 = vector.multi_reduction <maximumf>, %271, %cst_70 [1] : vector<1x128xf32> to vector<1xf32>
    %274 = vector.shape_cast %273 : vector<1xf32> to vector<1x1xf32>
    %275 = vector.broadcast %274 : vector<1x1xf32> to vector<1x128xf32>
    %276 = arith.subf %271, %275 : vector<1x128xf32>
    %277 = math.exp %276 : vector<1x128xf32>
    %cst_71 = arith.constant dense<0.000000e+00> : vector<1xf32>
    %278 = vector.multi_reduction <add>, %277, %cst_71 [1] : vector<1x128xf32> to vector<1xf32>
    %279 = vector.shape_cast %278 : vector<1xf32> to vector<1x1xf32>
    %280 = vector.broadcast %279 : vector<1x1xf32> to vector<1x128xf32>
    %281 = arith.divf %277, %280 : vector<1x128xf32>
    %282 = vector.broadcast %274 : vector<1x1xf32> to vector<1x128xf32>
    %283 = arith.cmpf oeq, %271, %282 : vector<1x128xf32>
    %c128_i32_72 = arith.constant 128 : i32
    %284 = vector.broadcast %c128_i32_72 : i32 to vector<1x128xi32>
    %285 = arith.select %283, %3, %284 : vector<1x128xi1>, vector<1x128xi32>
    %cst_73 = arith.constant dense<2147483647> : vector<1xi32>
    %286 = vector.multi_reduction <minsi>, %285, %cst_73 [1] : vector<1x128xi32> to vector<1xi32>
    %287 = vector.shape_cast %286 : vector<1xi32> to vector<1x1xi32>
    %288 = vector.broadcast %287 : vector<1x1xi32> to vector<1x128xi32>
    %289 = arith.cmpi eq, %3, %288 : vector<1x128xi32>
    %290 = arith.extui %289 : vector<1x128xi1> to vector<1x128xi32>
    %291 = arith.sitofp %290 : vector<1x128xi32> to vector<1x128xf32>
    %292 = arith.mulf %272, %291 : vector<1x128xf32>
    %cst_74 = arith.constant dense<0.000000e+00> : vector<1xf32>
    %293 = vector.multi_reduction <add>, %292, %cst_74 [1] : vector<1x128xf32> to vector<1xf32>
    %294 = vector.shape_cast %293 : vector<1xf32> to vector<1x1xf32>
    %295 = vector.broadcast %211 : i32 to vector<1x128xi32>
    %296 = arith.cmpi eq, %4, %295 : vector<1x128xi32>
    %297 = vector.shape_cast %294 : vector<1x1xf32> to vector<1x1xf32>
    %298 = vector.broadcast %297 : vector<1x1xf32> to vector<1x128xf32>
    %299 = arith.select %296, %298, %197 : vector<1x128xi1>, vector<1x128xf32>
    %c8_i32_75 = arith.constant 8 : i32
    %300 = vector.broadcast %c8_i32_75 : i32 to vector<1x128xi32>
    %301 = arith.cmpi eq, %3, %300 : vector<1x128xi32>
    %302 = vector.shape_cast %294 : vector<1x1xf32> to vector<1x1xf32>
    %303 = vector.broadcast %302 : vector<1x1xf32> to vector<1x128xf32>
    %304 = arith.select %301, %303, %281 : vector<1x128xi1>, vector<1x128xf32>
    %c9_i32_76 = arith.constant 9 : i32
    %305 = vector.broadcast %c9_i32_76 : i32 to vector<1x128xi32>
    %306 = arith.cmpi eq, %3, %305 : vector<1x128xi32>
    %307 = arith.sitofp %287 : vector<1x1xi32> to vector<1x1xf32>
    %308 = vector.shape_cast %307 : vector<1x1xf32> to vector<1x1xf32>
    %309 = vector.broadcast %308 : vector<1x1xf32> to vector<1x128xf32>
    %310 = arith.select %306, %309, %304 : vector<1x128xi1>, vector<1x128xf32>
    %c2 = arith.constant 2 : index
    %c0_77 = arith.constant 0 : index
    %311 = vector.load %arg7[%c2, %c0_77] : memref<8x128xf32, #tpu.memory_space<vmem>>, vector<1x128xf32>
    tpu.vector_store %arg7[%c2, %c0_77], %310 {strides = array<i32>} : memref<8x128xf32, #tpu.memory_space<vmem>>, vector<1x128xf32>,
    %c8_i32_78 = arith.constant 8 : i32
    %312 = arith.muli %arg0, %c8_i32_78 : i32
    %c3_i32 = arith.constant 3 : i32
    %313 = arith.addi %312, %c3_i32 : i32
    %314 = arith.index_cast %313 : i32 to index
    %315 = memref.load %arg1[%314] : memref<8xi32, #tpu.memory_space<smem>>
    %c2_i32_79 = arith.constant 2 : i32
    %316 = arith.muli %313, %c2_i32_79 : i32
    %317 = arith.index_cast %316 : i32 to index
    %318 = memref.load %arg2[%317] : memref<16xi32, #tpu.memory_space<smem>>
    %319 = vector.broadcast %318 : i32 to vector<1x128xi32>
    %320 = arith.cmpi eq, %4, %319 : vector<1x128xi32>
    %321 = arith.extui %320 : vector<1x128xi1> to vector<1x128xi32>
    %322 = arith.sitofp %321 : vector<1x128xi32> to vector<1x128xf32>
    %c1_i32_80 = arith.constant 1 : i32
    %323 = arith.addi %316, %c1_i32_80 : i32
    %324 = arith.index_cast %323 : i32 to index
    %325 = memref.load %arg2[%324] : memref<16xi32, #tpu.memory_space<smem>>
    %326 = vector.broadcast %325 : i32 to vector<1x128xi32>
    %327 = arith.cmpi eq, %4, %326 : vector<1x128xi32>
    %328 = arith.extui %327 : vector<1x128xi1> to vector<1x128xi32>
    %329 = arith.sitofp %328 : vector<1x128xi32> to vector<1x128xf32>
    %330 = arith.addf %322, %329 : vector<1x128xf32>
    %cst_81 = arith.constant dense<0.000000e+00> : vector<1xf32>
    %331 = vector.multi_reduction <add>, %330, %cst_81 [1] : vector<1x128xf32> to vector<1xf32>
    %332 = vector.shape_cast %331 : vector<1xf32> to vector<1x1xf32>
    %cst_82 = arith.constant 0.000000e+00 : f32
    %333 = vector.broadcast %cst_82 : f32 to vector<1x1xf32>
    %334 = arith.cmpf ogt, %332, %333 : vector<1x1xf32>
    %335 = arith.mulf %299, %330 : vector<1x128xf32>
    %cst_83 = arith.constant dense<0.000000e+00> : vector<1xf32>
    %336 = vector.multi_reduction <add>, %335, %cst_83 [1] : vector<1x128xf32> to vector<1xf32>
    %337 = vector.shape_cast %336 : vector<1xf32> to vector<1x1xf32>
    %cst_84 = arith.constant 1.000000e+00 : f32
    %338 = vector.broadcast %cst_84 : f32 to vector<1x1xf32>
    %339 = arith.maximumf %332, %338 : vector<1x1xf32>
    %340 = arith.divf %337, %339 : vector<1x1xf32>
    %cst_85 = arith.constant 0.000000e+00 : f32
    %341 = vector.broadcast %cst_85 : f32 to vector<1x1xf32>
    %342 = arith.select %334, %340, %341 : vector<1x1xi1>, vector<1x1xf32>
    %343 = arith.index_cast %315 : i32 to index
    %c0_86 = arith.constant 0 : index
    %c0_87 = arith.constant 0 : index
    %344 = vector.load %arg3[%343, %c0_86, %c0_87] : memref<3x1x128xf32, #tpu.memory_space<vmem>>, vector<1x1x128xf32>
    %345 = vector.shape_cast %344 : vector<1x1x128xf32> to vector<1x128xf32>
    %346 = arith.index_cast %315 : i32 to index
    %c0_88 = arith.constant 0 : index
    %c0_89 = arith.constant 0 : index
    %347 = vector.load %arg4[%346, %c0_88, %c0_89] : memref<3x1x128xf32, #tpu.memory_space<vmem>>, vector<1x1x128xf32>
    %348 = vector.shape_cast %347 : vector<1x1x128xf32> to vector<1x128xf32>
    %349 = vector.broadcast %342 : vector<1x1xf32> to vector<1x128xf32>
    %350 = arith.mulf %349, %348 : vector<1x128xf32>
    %351 = arith.addf %345, %350 : vector<1x128xf32>
    %352 = arith.negf %351 : vector<1x128xf32>
    %353 = math.exp %352 : vector<1x128xf32>
    %cst_90 = arith.constant 1.000000e+00 : f32
    %354 = vector.broadcast %cst_90 : f32 to vector<1x128xf32>
    %355 = arith.addf %354, %353 : vector<1x128xf32>
    %356 = arith.divf %354, %355 : vector<1x128xf32>
    %357 = math.tanh %351 : vector<1x128xf32>
    %358 = vector.extract_strided_slice %356 {offsets = [0, 0], sizes = [1, 32], strides = [1, 1]} : vector<1x128xf32> to vector<1x32xf32>
    %359 = vector.extract_strided_slice %357 {offsets = [0, 64], sizes = [1, 32], strides = [1, 1]} : vector<1x128xf32> to vector<1x32xf32>
    %360 = vector.extract_strided_slice %356 {offsets = [0, 96], sizes = [1, 32], strides = [1, 1]} : vector<1x128xf32> to vector<1x32xf32>
    %361 = arith.mulf %358, %359 : vector<1x32xf32>
    %362 = math.tanh %361 : vector<1x32xf32>
    %363 = arith.mulf %360, %362 : vector<1x32xf32>
    %364 = arith.truncf %363 : vector<1x32xf32> to vector<1x32xbf16>
    %365 = arith.index_cast %315 : i32 to index
    %c0_91 = arith.constant 0 : index
    %c0_92 = arith.constant 0 : index
    %366 = vector.load %arg6[%365, %c0_91, %c0_92] : memref<3x32x256xbf16, #tpu.memory_space<vmem>>, vector<1x32x256xbf16>
    %367 = vector.shape_cast %366 : vector<1x32x256xbf16> to vector<32x256xbf16>
    %cst_93 = arith.constant dense<0.000000e+00> : vector<1x256xf32>
    %368 = tpu.matmul %364, %367, %cst_93 {dimension_numbers = #tpu.dot_dimension_numbers<[1], [0], [0], [1], [0, 0, 1, 1], [], []>} : vector<1x32xbf16>, vector<32x256xbf16>, vector<1x256xf32> -> vector<1x256xf32>
    %369 = arith.index_cast %315 : i32 to index
    %c0_94 = arith.constant 0 : index
    %c0_95 = arith.constant 0 : index
    %370 = vector.load %arg5[%369, %c0_94, %c0_95] : memref<3x1x256xf32, #tpu.memory_space<vmem>>, vector<1x1x256xf32>
    %371 = vector.shape_cast %370 : vector<1x1x256xf32> to vector<1x256xf32>
    %372 = arith.addf %368, %371 : vector<1x256xf32>
    %373 = vector.extract_strided_slice %372 {offsets = [0, 0], sizes = [1, 128], strides = [1, 1]} : vector<1x256xf32> to vector<1x128xf32>
    %374 = vector.extract_strided_slice %372 {offsets = [0, 128], sizes = [1, 128], strides = [1, 1]} : vector<1x256xf32> to vector<1x128xf32>
    %cst_96 = arith.constant dense<0xFF800000> : vector<1xf32>
    %375 = vector.multi_reduction <maximumf>, %373, %cst_96 [1] : vector<1x128xf32> to vector<1xf32>
    %376 = vector.shape_cast %375 : vector<1xf32> to vector<1x1xf32>
    %377 = vector.broadcast %376 : vector<1x1xf32> to vector<1x128xf32>
    %378 = arith.subf %373, %377 : vector<1x128xf32>
    %379 = math.exp %378 : vector<1x128xf32>
    %cst_97 = arith.constant dense<0.000000e+00> : vector<1xf32>
    %380 = vector.multi_reduction <add>, %379, %cst_97 [1] : vector<1x128xf32> to vector<1xf32>
    %381 = vector.shape_cast %380 : vector<1xf32> to vector<1x1xf32>
    %382 = vector.broadcast %381 : vector<1x1xf32> to vector<1x128xf32>
    %383 = arith.divf %379, %382 : vector<1x128xf32>
    %384 = vector.broadcast %376 : vector<1x1xf32> to vector<1x128xf32>
    %385 = arith.cmpf oeq, %373, %384 : vector<1x128xf32>
    %c128_i32_98 = arith.constant 128 : i32
    %386 = vector.broadcast %c128_i32_98 : i32 to vector<1x128xi32>
    %387 = arith.select %385, %3, %386 : vector<1x128xi1>, vector<1x128xi32>
    %cst_99 = arith.constant dense<2147483647> : vector<1xi32>
    %388 = vector.multi_reduction <minsi>, %387, %cst_99 [1] : vector<1x128xi32> to vector<1xi32>
    %389 = vector.shape_cast %388 : vector<1xi32> to vector<1x1xi32>
    %390 = vector.broadcast %389 : vector<1x1xi32> to vector<1x128xi32>
    %391 = arith.cmpi eq, %3, %390 : vector<1x128xi32>
    %392 = arith.extui %391 : vector<1x128xi1> to vector<1x128xi32>
    %393 = arith.sitofp %392 : vector<1x128xi32> to vector<1x128xf32>
    %394 = arith.mulf %374, %393 : vector<1x128xf32>
    %cst_100 = arith.constant dense<0.000000e+00> : vector<1xf32>
    %395 = vector.multi_reduction <add>, %394, %cst_100 [1] : vector<1x128xf32> to vector<1xf32>
    %396 = vector.shape_cast %395 : vector<1xf32> to vector<1x1xf32>
    %397 = vector.broadcast %313 : i32 to vector<1x128xi32>
    %398 = arith.cmpi eq, %4, %397 : vector<1x128xi32>
    %399 = vector.shape_cast %396 : vector<1x1xf32> to vector<1x1xf32>
    %400 = vector.broadcast %399 : vector<1x1xf32> to vector<1x128xf32>
    %401 = arith.select %398, %400, %299 : vector<1x128xi1>, vector<1x128xf32>
    %c8_i32_101 = arith.constant 8 : i32
    %402 = vector.broadcast %c8_i32_101 : i32 to vector<1x128xi32>
    %403 = arith.cmpi eq, %3, %402 : vector<1x128xi32>
    %404 = vector.shape_cast %396 : vector<1x1xf32> to vector<1x1xf32>
    %405 = vector.broadcast %404 : vector<1x1xf32> to vector<1x128xf32>
    %406 = arith.select %403, %405, %383 : vector<1x128xi1>, vector<1x128xf32>
    %c9_i32_102 = arith.constant 9 : i32
    %407 = vector.broadcast %c9_i32_102 : i32 to vector<1x128xi32>
    %408 = arith.cmpi eq, %3, %407 : vector<1x128xi32>
    %409 = arith.sitofp %389 : vector<1x1xi32> to vector<1x1xf32>
    %410 = vector.shape_cast %409 : vector<1x1xf32> to vector<1x1xf32>
    %411 = vector.broadcast %410 : vector<1x1xf32> to vector<1x128xf32>
    %412 = arith.select %408, %411, %406 : vector<1x128xi1>, vector<1x128xf32>
    %c3 = arith.constant 3 : index
    %c0_103 = arith.constant 0 : index
    %413 = vector.load %arg7[%c3, %c0_103] : memref<8x128xf32, #tpu.memory_space<vmem>>, vector<1x128xf32>
    tpu.vector_store %arg7[%c3, %c0_103], %412 {strides = array<i32>} : memref<8x128xf32, #tpu.memory_space<vmem>>, vector<1x128xf32>,
    %c8_i32_104 = arith.constant 8 : i32
    %414 = arith.muli %arg0, %c8_i32_104 : i32
    %c4_i32 = arith.constant 4 : i32
    %415 = arith.addi %414, %c4_i32 : i32
    %416 = arith.index_cast %415 : i32 to index
    %417 = memref.load %arg1[%416] : memref<8xi32, #tpu.memory_space<smem>>
    %c2_i32_105 = arith.constant 2 : i32
    %418 = arith.muli %415, %c2_i32_105 : i32
    %419 = arith.index_cast %418 : i32 to index
    %420 = memref.load %arg2[%419] : memref<16xi32, #tpu.memory_space<smem>>
    %421 = vector.broadcast %420 : i32 to vector<1x128xi32>
    %422 = arith.cmpi eq, %4, %421 : vector<1x128xi32>
    %423 = arith.extui %422 : vector<1x128xi1> to vector<1x128xi32>
    %424 = arith.sitofp %423 : vector<1x128xi32> to vector<1x128xf32>
    %c1_i32_106 = arith.constant 1 : i32
    %425 = arith.addi %418, %c1_i32_106 : i32
    %426 = arith.index_cast %425 : i32 to index
    %427 = memref.load %arg2[%426] : memref<16xi32, #tpu.memory_space<smem>>
    %428 = vector.broadcast %427 : i32 to vector<1x128xi32>
    %429 = arith.cmpi eq, %4, %428 : vector<1x128xi32>
    %430 = arith.extui %429 : vector<1x128xi1> to vector<1x128xi32>
    %431 = arith.sitofp %430 : vector<1x128xi32> to vector<1x128xf32>
    %432 = arith.addf %424, %431 : vector<1x128xf32>
    %cst_107 = arith.constant dense<0.000000e+00> : vector<1xf32>
    %433 = vector.multi_reduction <add>, %432, %cst_107 [1] : vector<1x128xf32> to vector<1xf32>
    %434 = vector.shape_cast %433 : vector<1xf32> to vector<1x1xf32>
    %cst_108 = arith.constant 0.000000e+00 : f32
    %435 = vector.broadcast %cst_108 : f32 to vector<1x1xf32>
    %436 = arith.cmpf ogt, %434, %435 : vector<1x1xf32>
    %437 = arith.mulf %401, %432 : vector<1x128xf32>
    %cst_109 = arith.constant dense<0.000000e+00> : vector<1xf32>
    %438 = vector.multi_reduction <add>, %437, %cst_109 [1] : vector<1x128xf32> to vector<1xf32>
    %439 = vector.shape_cast %438 : vector<1xf32> to vector<1x1xf32>
    %cst_110 = arith.constant 1.000000e+00 : f32
    %440 = vector.broadcast %cst_110 : f32 to vector<1x1xf32>
    %441 = arith.maximumf %434, %440 : vector<1x1xf32>
    %442 = arith.divf %439, %441 : vector<1x1xf32>
    %cst_111 = arith.constant 0.000000e+00 : f32
    %443 = vector.broadcast %cst_111 : f32 to vector<1x1xf32>
    %444 = arith.select %436, %442, %443 : vector<1x1xi1>, vector<1x1xf32>
    %445 = arith.index_cast %417 : i32 to index
    %c0_112 = arith.constant 0 : index
    %c0_113 = arith.constant 0 : index
    %446 = vector.load %arg3[%445, %c0_112, %c0_113] : memref<3x1x128xf32, #tpu.memory_space<vmem>>, vector<1x1x128xf32>
    %447 = vector.shape_cast %446 : vector<1x1x128xf32> to vector<1x128xf32>
    %448 = arith.index_cast %417 : i32 to index
    %c0_114 = arith.constant 0 : index
    %c0_115 = arith.constant 0 : index
    %449 = vector.load %arg4[%448, %c0_114, %c0_115] : memref<3x1x128xf32, #tpu.memory_space<vmem>>, vector<1x1x128xf32>
    %450 = vector.shape_cast %449 : vector<1x1x128xf32> to vector<1x128xf32>
    %451 = vector.broadcast %444 : vector<1x1xf32> to vector<1x128xf32>
    %452 = arith.mulf %451, %450 : vector<1x128xf32>
    %453 = arith.addf %447, %452 : vector<1x128xf32>
    %454 = arith.negf %453 : vector<1x128xf32>
    %455 = math.exp %454 : vector<1x128xf32>
    %cst_116 = arith.constant 1.000000e+00 : f32
    %456 = vector.broadcast %cst_116 : f32 to vector<1x128xf32>
    %457 = arith.addf %456, %455 : vector<1x128xf32>
    %458 = arith.divf %456, %457 : vector<1x128xf32>
    %459 = math.tanh %453 : vector<1x128xf32>
    %460 = vector.extract_strided_slice %458 {offsets = [0, 0], sizes = [1, 32], strides = [1, 1]} : vector<1x128xf32> to vector<1x32xf32>
    %461 = vector.extract_strided_slice %459 {offsets = [0, 64], sizes = [1, 32], strides = [1, 1]} : vector<1x128xf32> to vector<1x32xf32>
    %462 = vector.extract_strided_slice %458 {offsets = [0, 96], sizes = [1, 32], strides = [1, 1]} : vector<1x128xf32> to vector<1x32xf32>
    %463 = arith.mulf %460, %461 : vector<1x32xf32>
    %464 = math.tanh %463 : vector<1x32xf32>
    %465 = arith.mulf %462, %464 : vector<1x32xf32>
    %466 = arith.truncf %465 : vector<1x32xf32> to vector<1x32xbf16>
    %467 = arith.index_cast %417 : i32 to index
    %c0_117 = arith.constant 0 : index
    %c0_118 = arith.constant 0 : index
    %468 = vector.load %arg6[%467, %c0_117, %c0_118] : memref<3x32x256xbf16, #tpu.memory_space<vmem>>, vector<1x32x256xbf16>
    %469 = vector.shape_cast %468 : vector<1x32x256xbf16> to vector<32x256xbf16>
    %cst_119 = arith.constant dense<0.000000e+00> : vector<1x256xf32>
    %470 = tpu.matmul %466, %469, %cst_119 {dimension_numbers = #tpu.dot_dimension_numbers<[1], [0], [0], [1], [0, 0, 1, 1], [], []>} : vector<1x32xbf16>, vector<32x256xbf16>, vector<1x256xf32> -> vector<1x256xf32>
    %471 = arith.index_cast %417 : i32 to index
    %c0_120 = arith.constant 0 : index
    %c0_121 = arith.constant 0 : index
    %472 = vector.load %arg5[%471, %c0_120, %c0_121] : memref<3x1x256xf32, #tpu.memory_space<vmem>>, vector<1x1x256xf32>
    %473 = vector.shape_cast %472 : vector<1x1x256xf32> to vector<1x256xf32>
    %474 = arith.addf %470, %473 : vector<1x256xf32>
    %475 = vector.extract_strided_slice %474 {offsets = [0, 0], sizes = [1, 128], strides = [1, 1]} : vector<1x256xf32> to vector<1x128xf32>
    %476 = vector.extract_strided_slice %474 {offsets = [0, 128], sizes = [1, 128], strides = [1, 1]} : vector<1x256xf32> to vector<1x128xf32>
    %cst_122 = arith.constant dense<0xFF800000> : vector<1xf32>
    %477 = vector.multi_reduction <maximumf>, %475, %cst_122 [1] : vector<1x128xf32> to vector<1xf32>
    %478 = vector.shape_cast %477 : vector<1xf32> to vector<1x1xf32>
    %479 = vector.broadcast %478 : vector<1x1xf32> to vector<1x128xf32>
    %480 = arith.subf %475, %479 : vector<1x128xf32>
    %481 = math.exp %480 : vector<1x128xf32>
    %cst_123 = arith.constant dense<0.000000e+00> : vector<1xf32>
    %482 = vector.multi_reduction <add>, %481, %cst_123 [1] : vector<1x128xf32> to vector<1xf32>
    %483 = vector.shape_cast %482 : vector<1xf32> to vector<1x1xf32>
    %484 = vector.broadcast %483 : vector<1x1xf32> to vector<1x128xf32>
    %485 = arith.divf %481, %484 : vector<1x128xf32>
    %486 = vector.broadcast %478 : vector<1x1xf32> to vector<1x128xf32>
    %487 = arith.cmpf oeq, %475, %486 : vector<1x128xf32>
    %c128_i32_124 = arith.constant 128 : i32
    %488 = vector.broadcast %c128_i32_124 : i32 to vector<1x128xi32>
    %489 = arith.select %487, %3, %488 : vector<1x128xi1>, vector<1x128xi32>
    %cst_125 = arith.constant dense<2147483647> : vector<1xi32>
    %490 = vector.multi_reduction <minsi>, %489, %cst_125 [1] : vector<1x128xi32> to vector<1xi32>
    %491 = vector.shape_cast %490 : vector<1xi32> to vector<1x1xi32>
    %492 = vector.broadcast %491 : vector<1x1xi32> to vector<1x128xi32>
    %493 = arith.cmpi eq, %3, %492 : vector<1x128xi32>
    %494 = arith.extui %493 : vector<1x128xi1> to vector<1x128xi32>
    %495 = arith.sitofp %494 : vector<1x128xi32> to vector<1x128xf32>
    %496 = arith.mulf %476, %495 : vector<1x128xf32>
    %cst_126 = arith.constant dense<0.000000e+00> : vector<1xf32>
    %497 = vector.multi_reduction <add>, %496, %cst_126 [1] : vector<1x128xf32> to vector<1xf32>
    %498 = vector.shape_cast %497 : vector<1xf32> to vector<1x1xf32>
    %499 = vector.broadcast %415 : i32 to vector<1x128xi32>
    %500 = arith.cmpi eq, %4, %499 : vector<1x128xi32>
    %501 = vector.shape_cast %498 : vector<1x1xf32> to vector<1x1xf32>
    %502 = vector.broadcast %501 : vector<1x1xf32> to vector<1x128xf32>
    %503 = arith.select %500, %502, %401 : vector<1x128xi1>, vector<1x128xf32>
    %c8_i32_127 = arith.constant 8 : i32
    %504 = vector.broadcast %c8_i32_127 : i32 to vector<1x128xi32>
    %505 = arith.cmpi eq, %3, %504 : vector<1x128xi32>
    %506 = vector.shape_cast %498 : vector<1x1xf32> to vector<1x1xf32>
    %507 = vector.broadcast %506 : vector<1x1xf32> to vector<1x128xf32>
    %508 = arith.select %505, %507, %485 : vector<1x128xi1>, vector<1x128xf32>
    %c9_i32_128 = arith.constant 9 : i32
    %509 = vector.broadcast %c9_i32_128 : i32 to vector<1x128xi32>
    %510 = arith.cmpi eq, %3, %509 : vector<1x128xi32>
    %511 = arith.sitofp %491 : vector<1x1xi32> to vector<1x1xf32>
    %512 = vector.shape_cast %511 : vector<1x1xf32> to vector<1x1xf32>
    %513 = vector.broadcast %512 : vector<1x1xf32> to vector<1x128xf32>
    %514 = arith.select %510, %513, %508 : vector<1x128xi1>, vector<1x128xf32>
    %c4 = arith.constant 4 : index
    %c0_129 = arith.constant 0 : index
    %515 = vector.load %arg7[%c4, %c0_129] : memref<8x128xf32, #tpu.memory_space<vmem>>, vector<1x128xf32>
    tpu.vector_store %arg7[%c4, %c0_129], %514 {strides = array<i32>} : memref<8x128xf32, #tpu.memory_space<vmem>>, vector<1x128xf32>,
    %c8_i32_130 = arith.constant 8 : i32
    %516 = arith.muli %arg0, %c8_i32_130 : i32
    %c5_i32 = arith.constant 5 : i32
    %517 = arith.addi %516, %c5_i32 : i32
    %518 = arith.index_cast %517 : i32 to index
    %519 = memref.load %arg1[%518] : memref<8xi32, #tpu.memory_space<smem>>
    %c2_i32_131 = arith.constant 2 : i32
    %520 = arith.muli %517, %c2_i32_131 : i32
    %521 = arith.index_cast %520 : i32 to index
    %522 = memref.load %arg2[%521] : memref<16xi32, #tpu.memory_space<smem>>
    %523 = vector.broadcast %522 : i32 to vector<1x128xi32>
    %524 = arith.cmpi eq, %4, %523 : vector<1x128xi32>
    %525 = arith.extui %524 : vector<1x128xi1> to vector<1x128xi32>
    %526 = arith.sitofp %525 : vector<1x128xi32> to vector<1x128xf32>
    %c1_i32_132 = arith.constant 1 : i32
    %527 = arith.addi %520, %c1_i32_132 : i32
    %528 = arith.index_cast %527 : i32 to index
    %529 = memref.load %arg2[%528] : memref<16xi32, #tpu.memory_space<smem>>
    %530 = vector.broadcast %529 : i32 to vector<1x128xi32>
    %531 = arith.cmpi eq, %4, %530 : vector<1x128xi32>
    %532 = arith.extui %531 : vector<1x128xi1> to vector<1x128xi32>
    %533 = arith.sitofp %532 : vector<1x128xi32> to vector<1x128xf32>
    %534 = arith.addf %526, %533 : vector<1x128xf32>
    %cst_133 = arith.constant dense<0.000000e+00> : vector<1xf32>
    %535 = vector.multi_reduction <add>, %534, %cst_133 [1] : vector<1x128xf32> to vector<1xf32>
    %536 = vector.shape_cast %535 : vector<1xf32> to vector<1x1xf32>
    %cst_134 = arith.constant 0.000000e+00 : f32
    %537 = vector.broadcast %cst_134 : f32 to vector<1x1xf32>
    %538 = arith.cmpf ogt, %536, %537 : vector<1x1xf32>
    %539 = arith.mulf %503, %534 : vector<1x128xf32>
    %cst_135 = arith.constant dense<0.000000e+00> : vector<1xf32>
    %540 = vector.multi_reduction <add>, %539, %cst_135 [1] : vector<1x128xf32> to vector<1xf32>
    %541 = vector.shape_cast %540 : vector<1xf32> to vector<1x1xf32>
    %cst_136 = arith.constant 1.000000e+00 : f32
    %542 = vector.broadcast %cst_136 : f32 to vector<1x1xf32>
    %543 = arith.maximumf %536, %542 : vector<1x1xf32>
    %544 = arith.divf %541, %543 : vector<1x1xf32>
    %cst_137 = arith.constant 0.000000e+00 : f32
    %545 = vector.broadcast %cst_137 : f32 to vector<1x1xf32>
    %546 = arith.select %538, %544, %545 : vector<1x1xi1>, vector<1x1xf32>
    %547 = arith.index_cast %519 : i32 to index
    %c0_138 = arith.constant 0 : index
    %c0_139 = arith.constant 0 : index
    %548 = vector.load %arg3[%547, %c0_138, %c0_139] : memref<3x1x128xf32, #tpu.memory_space<vmem>>, vector<1x1x128xf32>
    %549 = vector.shape_cast %548 : vector<1x1x128xf32> to vector<1x128xf32>
    %550 = arith.index_cast %519 : i32 to index
    %c0_140 = arith.constant 0 : index
    %c0_141 = arith.constant 0 : index
    %551 = vector.load %arg4[%550, %c0_140, %c0_141] : memref<3x1x128xf32, #tpu.memory_space<vmem>>, vector<1x1x128xf32>
    %552 = vector.shape_cast %551 : vector<1x1x128xf32> to vector<1x128xf32>
    %553 = vector.broadcast %546 : vector<1x1xf32> to vector<1x128xf32>
    %554 = arith.mulf %553, %552 : vector<1x128xf32>
    %555 = arith.addf %549, %554 : vector<1x128xf32>
    %556 = arith.negf %555 : vector<1x128xf32>
    %557 = math.exp %556 : vector<1x128xf32>
    %cst_142 = arith.constant 1.000000e+00 : f32
    %558 = vector.broadcast %cst_142 : f32 to vector<1x128xf32>
    %559 = arith.addf %558, %557 : vector<1x128xf32>
    %560 = arith.divf %558, %559 : vector<1x128xf32>
    %561 = math.tanh %555 : vector<1x128xf32>
    %562 = vector.extract_strided_slice %560 {offsets = [0, 0], sizes = [1, 32], strides = [1, 1]} : vector<1x128xf32> to vector<1x32xf32>
    %563 = vector.extract_strided_slice %561 {offsets = [0, 64], sizes = [1, 32], strides = [1, 1]} : vector<1x128xf32> to vector<1x32xf32>
    %564 = vector.extract_strided_slice %560 {offsets = [0, 96], sizes = [1, 32], strides = [1, 1]} : vector<1x128xf32> to vector<1x32xf32>
    %565 = arith.mulf %562, %563 : vector<1x32xf32>
    %566 = math.tanh %565 : vector<1x32xf32>
    %567 = arith.mulf %564, %566 : vector<1x32xf32>
    %568 = arith.truncf %567 : vector<1x32xf32> to vector<1x32xbf16>
    %569 = arith.index_cast %519 : i32 to index
    %c0_143 = arith.constant 0 : index
    %c0_144 = arith.constant 0 : index
    %570 = vector.load %arg6[%569, %c0_143, %c0_144] : memref<3x32x256xbf16, #tpu.memory_space<vmem>>, vector<1x32x256xbf16>
    %571 = vector.shape_cast %570 : vector<1x32x256xbf16> to vector<32x256xbf16>
    %cst_145 = arith.constant dense<0.000000e+00> : vector<1x256xf32>
    %572 = tpu.matmul %568, %571, %cst_145 {dimension_numbers = #tpu.dot_dimension_numbers<[1], [0], [0], [1], [0, 0, 1, 1], [], []>} : vector<1x32xbf16>, vector<32x256xbf16>, vector<1x256xf32> -> vector<1x256xf32>
    %573 = arith.index_cast %519 : i32 to index
    %c0_146 = arith.constant 0 : index
    %c0_147 = arith.constant 0 : index
    %574 = vector.load %arg5[%573, %c0_146, %c0_147] : memref<3x1x256xf32, #tpu.memory_space<vmem>>, vector<1x1x256xf32>
    %575 = vector.shape_cast %574 : vector<1x1x256xf32> to vector<1x256xf32>
    %576 = arith.addf %572, %575 : vector<1x256xf32>
    %577 = vector.extract_strided_slice %576 {offsets = [0, 0], sizes = [1, 128], strides = [1, 1]} : vector<1x256xf32> to vector<1x128xf32>
    %578 = vector.extract_strided_slice %576 {offsets = [0, 128], sizes = [1, 128], strides = [1, 1]} : vector<1x256xf32> to vector<1x128xf32>
    %cst_148 = arith.constant dense<0xFF800000> : vector<1xf32>
    %579 = vector.multi_reduction <maximumf>, %577, %cst_148 [1] : vector<1x128xf32> to vector<1xf32>
    %580 = vector.shape_cast %579 : vector<1xf32> to vector<1x1xf32>
    %581 = vector.broadcast %580 : vector<1x1xf32> to vector<1x128xf32>
    %582 = arith.subf %577, %581 : vector<1x128xf32>
    %583 = math.exp %582 : vector<1x128xf32>
    %cst_149 = arith.constant dense<0.000000e+00> : vector<1xf32>
    %584 = vector.multi_reduction <add>, %583, %cst_149 [1] : vector<1x128xf32> to vector<1xf32>
    %585 = vector.shape_cast %584 : vector<1xf32> to vector<1x1xf32>
    %586 = vector.broadcast %585 : vector<1x1xf32> to vector<1x128xf32>
    %587 = arith.divf %583, %586 : vector<1x128xf32>
    %588 = vector.broadcast %580 : vector<1x1xf32> to vector<1x128xf32>
    %589 = arith.cmpf oeq, %577, %588 : vector<1x128xf32>
    %c128_i32_150 = arith.constant 128 : i32
    %590 = vector.broadcast %c128_i32_150 : i32 to vector<1x128xi32>
    %591 = arith.select %589, %3, %590 : vector<1x128xi1>, vector<1x128xi32>
    %cst_151 = arith.constant dense<2147483647> : vector<1xi32>
    %592 = vector.multi_reduction <minsi>, %591, %cst_151 [1] : vector<1x128xi32> to vector<1xi32>
    %593 = vector.shape_cast %592 : vector<1xi32> to vector<1x1xi32>
    %594 = vector.broadcast %593 : vector<1x1xi32> to vector<1x128xi32>
    %595 = arith.cmpi eq, %3, %594 : vector<1x128xi32>
    %596 = arith.extui %595 : vector<1x128xi1> to vector<1x128xi32>
    %597 = arith.sitofp %596 : vector<1x128xi32> to vector<1x128xf32>
    %598 = arith.mulf %578, %597 : vector<1x128xf32>
    %cst_152 = arith.constant dense<0.000000e+00> : vector<1xf32>
    %599 = vector.multi_reduction <add>, %598, %cst_152 [1] : vector<1x128xf32> to vector<1xf32>
    %600 = vector.shape_cast %599 : vector<1xf32> to vector<1x1xf32>
    %601 = vector.broadcast %517 : i32 to vector<1x128xi32>
    %602 = arith.cmpi eq, %4, %601 : vector<1x128xi32>
    %603 = vector.shape_cast %600 : vector<1x1xf32> to vector<1x1xf32>
    %604 = vector.broadcast %603 : vector<1x1xf32> to vector<1x128xf32>
    %605 = arith.select %602, %604, %503 : vector<1x128xi1>, vector<1x128xf32>
    %c8_i32_153 = arith.constant 8 : i32
    %606 = vector.broadcast %c8_i32_153 : i32 to vector<1x128xi32>
    %607 = arith.cmpi eq, %3, %606 : vector<1x128xi32>
    %608 = vector.shape_cast %600 : vector<1x1xf32> to vector<1x1xf32>
    %609 = vector.broadcast %608 : vector<1x1xf32> to vector<1x128xf32>
    %610 = arith.select %607, %609, %587 : vector<1x128xi1>, vector<1x128xf32>
    %c9_i32_154 = arith.constant 9 : i32
    %611 = vector.broadcast %c9_i32_154 : i32 to vector<1x128xi32>
    %612 = arith.cmpi eq, %3, %611 : vector<1x128xi32>
    %613 = arith.sitofp %593 : vector<1x1xi32> to vector<1x1xf32>
    %614 = vector.shape_cast %613 : vector<1x1xf32> to vector<1x1xf32>
    %615 = vector.broadcast %614 : vector<1x1xf32> to vector<1x128xf32>
    %616 = arith.select %612, %615, %610 : vector<1x128xi1>, vector<1x128xf32>
    %c5 = arith.constant 5 : index
    %c0_155 = arith.constant 0 : index
    %617 = vector.load %arg7[%c5, %c0_155] : memref<8x128xf32, #tpu.memory_space<vmem>>, vector<1x128xf32>
    tpu.vector_store %arg7[%c5, %c0_155], %616 {strides = array<i32>} : memref<8x128xf32, #tpu.memory_space<vmem>>, vector<1x128xf32>,
    %c8_i32_156 = arith.constant 8 : i32
    %618 = arith.muli %arg0, %c8_i32_156 : i32
    %c6_i32 = arith.constant 6 : i32
    %619 = arith.addi %618, %c6_i32 : i32
    %620 = arith.index_cast %619 : i32 to index
    %621 = memref.load %arg1[%620] : memref<8xi32, #tpu.memory_space<smem>>
    %c2_i32_157 = arith.constant 2 : i32
    %622 = arith.muli %619, %c2_i32_157 : i32
    %623 = arith.index_cast %622 : i32 to index
    %624 = memref.load %arg2[%623] : memref<16xi32, #tpu.memory_space<smem>>
    %625 = vector.broadcast %624 : i32 to vector<1x128xi32>
    %626 = arith.cmpi eq, %4, %625 : vector<1x128xi32>
    %627 = arith.extui %626 : vector<1x128xi1> to vector<1x128xi32>
    %628 = arith.sitofp %627 : vector<1x128xi32> to vector<1x128xf32>
    %c1_i32_158 = arith.constant 1 : i32
    %629 = arith.addi %622, %c1_i32_158 : i32
    %630 = arith.index_cast %629 : i32 to index
    %631 = memref.load %arg2[%630] : memref<16xi32, #tpu.memory_space<smem>>
    %632 = vector.broadcast %631 : i32 to vector<1x128xi32>
    %633 = arith.cmpi eq, %4, %632 : vector<1x128xi32>
    %634 = arith.extui %633 : vector<1x128xi1> to vector<1x128xi32>
    %635 = arith.sitofp %634 : vector<1x128xi32> to vector<1x128xf32>
    %636 = arith.addf %628, %635 : vector<1x128xf32>
    %cst_159 = arith.constant dense<0.000000e+00> : vector<1xf32>
    %637 = vector.multi_reduction <add>, %636, %cst_159 [1] : vector<1x128xf32> to vector<1xf32>
    %638 = vector.shape_cast %637 : vector<1xf32> to vector<1x1xf32>
    %cst_160 = arith.constant 0.000000e+00 : f32
    %639 = vector.broadcast %cst_160 : f32 to vector<1x1xf32>
    %640 = arith.cmpf ogt, %638, %639 : vector<1x1xf32>
    %641 = arith.mulf %605, %636 : vector<1x128xf32>
    %cst_161 = arith.constant dense<0.000000e+00> : vector<1xf32>
    %642 = vector.multi_reduction <add>, %641, %cst_161 [1] : vector<1x128xf32> to vector<1xf32>
    %643 = vector.shape_cast %642 : vector<1xf32> to vector<1x1xf32>
    %cst_162 = arith.constant 1.000000e+00 : f32
    %644 = vector.broadcast %cst_162 : f32 to vector<1x1xf32>
    %645 = arith.maximumf %638, %644 : vector<1x1xf32>
    %646 = arith.divf %643, %645 : vector<1x1xf32>
    %cst_163 = arith.constant 0.000000e+00 : f32
    %647 = vector.broadcast %cst_163 : f32 to vector<1x1xf32>
    %648 = arith.select %640, %646, %647 : vector<1x1xi1>, vector<1x1xf32>
    %649 = arith.index_cast %621 : i32 to index
    %c0_164 = arith.constant 0 : index
    %c0_165 = arith.constant 0 : index
    %650 = vector.load %arg3[%649, %c0_164, %c0_165] : memref<3x1x128xf32, #tpu.memory_space<vmem>>, vector<1x1x128xf32>
    %651 = vector.shape_cast %650 : vector<1x1x128xf32> to vector<1x128xf32>
    %652 = arith.index_cast %621 : i32 to index
    %c0_166 = arith.constant 0 : index
    %c0_167 = arith.constant 0 : index
    %653 = vector.load %arg4[%652, %c0_166, %c0_167] : memref<3x1x128xf32, #tpu.memory_space<vmem>>, vector<1x1x128xf32>
    %654 = vector.shape_cast %653 : vector<1x1x128xf32> to vector<1x128xf32>
    %655 = vector.broadcast %648 : vector<1x1xf32> to vector<1x128xf32>
    %656 = arith.mulf %655, %654 : vector<1x128xf32>
    %657 = arith.addf %651, %656 : vector<1x128xf32>
    %658 = arith.negf %657 : vector<1x128xf32>
    %659 = math.exp %658 : vector<1x128xf32>
    %cst_168 = arith.constant 1.000000e+00 : f32
    %660 = vector.broadcast %cst_168 : f32 to vector<1x128xf32>
    %661 = arith.addf %660, %659 : vector<1x128xf32>
    %662 = arith.divf %660, %661 : vector<1x128xf32>
    %663 = math.tanh %657 : vector<1x128xf32>
    %664 = vector.extract_strided_slice %662 {offsets = [0, 0], sizes = [1, 32], strides = [1, 1]} : vector<1x128xf32> to vector<1x32xf32>
    %665 = vector.extract_strided_slice %663 {offsets = [0, 64], sizes = [1, 32], strides = [1, 1]} : vector<1x128xf32> to vector<1x32xf32>
    %666 = vector.extract_strided_slice %662 {offsets = [0, 96], sizes = [1, 32], strides = [1, 1]} : vector<1x128xf32> to vector<1x32xf32>
    %667 = arith.mulf %664, %665 : vector<1x32xf32>
    %668 = math.tanh %667 : vector<1x32xf32>
    %669 = arith.mulf %666, %668 : vector<1x32xf32>
    %670 = arith.truncf %669 : vector<1x32xf32> to vector<1x32xbf16>
    %671 = arith.index_cast %621 : i32 to index
    %c0_169 = arith.constant 0 : index
    %c0_170 = arith.constant 0 : index
    %672 = vector.load %arg6[%671, %c0_169, %c0_170] : memref<3x32x256xbf16, #tpu.memory_space<vmem>>, vector<1x32x256xbf16>
    %673 = vector.shape_cast %672 : vector<1x32x256xbf16> to vector<32x256xbf16>
    %cst_171 = arith.constant dense<0.000000e+00> : vector<1x256xf32>
    %674 = tpu.matmul %670, %673, %cst_171 {dimension_numbers = #tpu.dot_dimension_numbers<[1], [0], [0], [1], [0, 0, 1, 1], [], []>} : vector<1x32xbf16>, vector<32x256xbf16>, vector<1x256xf32> -> vector<1x256xf32>
    %675 = arith.index_cast %621 : i32 to index
    %c0_172 = arith.constant 0 : index
    %c0_173 = arith.constant 0 : index
    %676 = vector.load %arg5[%675, %c0_172, %c0_173] : memref<3x1x256xf32, #tpu.memory_space<vmem>>, vector<1x1x256xf32>
    %677 = vector.shape_cast %676 : vector<1x1x256xf32> to vector<1x256xf32>
    %678 = arith.addf %674, %677 : vector<1x256xf32>
    %679 = vector.extract_strided_slice %678 {offsets = [0, 0], sizes = [1, 128], strides = [1, 1]} : vector<1x256xf32> to vector<1x128xf32>
    %680 = vector.extract_strided_slice %678 {offsets = [0, 128], sizes = [1, 128], strides = [1, 1]} : vector<1x256xf32> to vector<1x128xf32>
    %cst_174 = arith.constant dense<0xFF800000> : vector<1xf32>
    %681 = vector.multi_reduction <maximumf>, %679, %cst_174 [1] : vector<1x128xf32> to vector<1xf32>
    %682 = vector.shape_cast %681 : vector<1xf32> to vector<1x1xf32>
    %683 = vector.broadcast %682 : vector<1x1xf32> to vector<1x128xf32>
    %684 = arith.subf %679, %683 : vector<1x128xf32>
    %685 = math.exp %684 : vector<1x128xf32>
    %cst_175 = arith.constant dense<0.000000e+00> : vector<1xf32>
    %686 = vector.multi_reduction <add>, %685, %cst_175 [1] : vector<1x128xf32> to vector<1xf32>
    %687 = vector.shape_cast %686 : vector<1xf32> to vector<1x1xf32>
    %688 = vector.broadcast %687 : vector<1x1xf32> to vector<1x128xf32>
    %689 = arith.divf %685, %688 : vector<1x128xf32>
    %690 = vector.broadcast %682 : vector<1x1xf32> to vector<1x128xf32>
    %691 = arith.cmpf oeq, %679, %690 : vector<1x128xf32>
    %c128_i32_176 = arith.constant 128 : i32
    %692 = vector.broadcast %c128_i32_176 : i32 to vector<1x128xi32>
    %693 = arith.select %691, %3, %692 : vector<1x128xi1>, vector<1x128xi32>
    %cst_177 = arith.constant dense<2147483647> : vector<1xi32>
    %694 = vector.multi_reduction <minsi>, %693, %cst_177 [1] : vector<1x128xi32> to vector<1xi32>
    %695 = vector.shape_cast %694 : vector<1xi32> to vector<1x1xi32>
    %696 = vector.broadcast %695 : vector<1x1xi32> to vector<1x128xi32>
    %697 = arith.cmpi eq, %3, %696 : vector<1x128xi32>
    %698 = arith.extui %697 : vector<1x128xi1> to vector<1x128xi32>
    %699 = arith.sitofp %698 : vector<1x128xi32> to vector<1x128xf32>
    %700 = arith.mulf %680, %699 : vector<1x128xf32>
    %cst_178 = arith.constant dense<0.000000e+00> : vector<1xf32>
    %701 = vector.multi_reduction <add>, %700, %cst_178 [1] : vector<1x128xf32> to vector<1xf32>
    %702 = vector.shape_cast %701 : vector<1xf32> to vector<1x1xf32>
    %703 = vector.broadcast %619 : i32 to vector<1x128xi32>
    %704 = arith.cmpi eq, %4, %703 : vector<1x128xi32>
    %705 = vector.shape_cast %702 : vector<1x1xf32> to vector<1x1xf32>
    %706 = vector.broadcast %705 : vector<1x1xf32> to vector<1x128xf32>
    %707 = arith.select %704, %706, %605 : vector<1x128xi1>, vector<1x128xf32>
    %c8_i32_179 = arith.constant 8 : i32
    %708 = vector.broadcast %c8_i32_179 : i32 to vector<1x128xi32>
    %709 = arith.cmpi eq, %3, %708 : vector<1x128xi32>
    %710 = vector.shape_cast %702 : vector<1x1xf32> to vector<1x1xf32>
    %711 = vector.broadcast %710 : vector<1x1xf32> to vector<1x128xf32>
    %712 = arith.select %709, %711, %689 : vector<1x128xi1>, vector<1x128xf32>
    %c9_i32_180 = arith.constant 9 : i32
    %713 = vector.broadcast %c9_i32_180 : i32 to vector<1x128xi32>
    %714 = arith.cmpi eq, %3, %713 : vector<1x128xi32>
    %715 = arith.sitofp %695 : vector<1x1xi32> to vector<1x1xf32>
    %716 = vector.shape_cast %715 : vector<1x1xf32> to vector<1x1xf32>
    %717 = vector.broadcast %716 : vector<1x1xf32> to vector<1x128xf32>
    %718 = arith.select %714, %717, %712 : vector<1x128xi1>, vector<1x128xf32>
    %c6 = arith.constant 6 : index
    %c0_181 = arith.constant 0 : index
    %719 = vector.load %arg7[%c6, %c0_181] : memref<8x128xf32, #tpu.memory_space<vmem>>, vector<1x128xf32>
    tpu.vector_store %arg7[%c6, %c0_181], %718 {strides = array<i32>} : memref<8x128xf32, #tpu.memory_space<vmem>>, vector<1x128xf32>,
    %c8_i32_182 = arith.constant 8 : i32
    %720 = arith.muli %arg0, %c8_i32_182 : i32
    %c7_i32 = arith.constant 7 : i32
    %721 = arith.addi %720, %c7_i32 : i32
    %722 = arith.index_cast %721 : i32 to index
    %723 = memref.load %arg1[%722] : memref<8xi32, #tpu.memory_space<smem>>
    %c2_i32_183 = arith.constant 2 : i32
    %724 = arith.muli %721, %c2_i32_183 : i32
    %725 = arith.index_cast %724 : i32 to index
    %726 = memref.load %arg2[%725] : memref<16xi32, #tpu.memory_space<smem>>
    %727 = vector.broadcast %726 : i32 to vector<1x128xi32>
    %728 = arith.cmpi eq, %4, %727 : vector<1x128xi32>
    %729 = arith.extui %728 : vector<1x128xi1> to vector<1x128xi32>
    %730 = arith.sitofp %729 : vector<1x128xi32> to vector<1x128xf32>
    %c1_i32_184 = arith.constant 1 : i32
    %731 = arith.addi %724, %c1_i32_184 : i32
    %732 = arith.index_cast %731 : i32 to index
    %733 = memref.load %arg2[%732] : memref<16xi32, #tpu.memory_space<smem>>
    %734 = vector.broadcast %733 : i32 to vector<1x128xi32>
    %735 = arith.cmpi eq, %4, %734 : vector<1x128xi32>
    %736 = arith.extui %735 : vector<1x128xi1> to vector<1x128xi32>
    %737 = arith.sitofp %736 : vector<1x128xi32> to vector<1x128xf32>
    %738 = arith.addf %730, %737 : vector<1x128xf32>
    %cst_185 = arith.constant dense<0.000000e+00> : vector<1xf32>
    %739 = vector.multi_reduction <add>, %738, %cst_185 [1] : vector<1x128xf32> to vector<1xf32>
    %740 = vector.shape_cast %739 : vector<1xf32> to vector<1x1xf32>
    %cst_186 = arith.constant 0.000000e+00 : f32
    %741 = vector.broadcast %cst_186 : f32 to vector<1x1xf32>
    %742 = arith.cmpf ogt, %740, %741 : vector<1x1xf32>
    %743 = arith.mulf %707, %738 : vector<1x128xf32>
    %cst_187 = arith.constant dense<0.000000e+00> : vector<1xf32>
    %744 = vector.multi_reduction <add>, %743, %cst_187 [1] : vector<1x128xf32> to vector<1xf32>
    %745 = vector.shape_cast %744 : vector<1xf32> to vector<1x1xf32>
    %cst_188 = arith.constant 1.000000e+00 : f32
    %746 = vector.broadcast %cst_188 : f32 to vector<1x1xf32>
    %747 = arith.maximumf %740, %746 : vector<1x1xf32>
    %748 = arith.divf %745, %747 : vector<1x1xf32>
    %cst_189 = arith.constant 0.000000e+00 : f32
    %749 = vector.broadcast %cst_189 : f32 to vector<1x1xf32>
    %750 = arith.select %742, %748, %749 : vector<1x1xi1>, vector<1x1xf32>
    %751 = arith.index_cast %723 : i32 to index
    %c0_190 = arith.constant 0 : index
    %c0_191 = arith.constant 0 : index
    %752 = vector.load %arg3[%751, %c0_190, %c0_191] : memref<3x1x128xf32, #tpu.memory_space<vmem>>, vector<1x1x128xf32>
    %753 = vector.shape_cast %752 : vector<1x1x128xf32> to vector<1x128xf32>
    %754 = arith.index_cast %723 : i32 to index
    %c0_192 = arith.constant 0 : index
    %c0_193 = arith.constant 0 : index
    %755 = vector.load %arg4[%754, %c0_192, %c0_193] : memref<3x1x128xf32, #tpu.memory_space<vmem>>, vector<1x1x128xf32>
    %756 = vector.shape_cast %755 : vector<1x1x128xf32> to vector<1x128xf32>
    %757 = vector.broadcast %750 : vector<1x1xf32> to vector<1x128xf32>
    %758 = arith.mulf %757, %756 : vector<1x128xf32>
    %759 = arith.addf %753, %758 : vector<1x128xf32>
    %760 = arith.negf %759 : vector<1x128xf32>
    %761 = math.exp %760 : vector<1x128xf32>
    %cst_194 = arith.constant 1.000000e+00 : f32
    %762 = vector.broadcast %cst_194 : f32 to vector<1x128xf32>
    %763 = arith.addf %762, %761 : vector<1x128xf32>
    %764 = arith.divf %762, %763 : vector<1x128xf32>
    %765 = math.tanh %759 : vector<1x128xf32>
    %766 = vector.extract_strided_slice %764 {offsets = [0, 0], sizes = [1, 32], strides = [1, 1]} : vector<1x128xf32> to vector<1x32xf32>
    %767 = vector.extract_strided_slice %765 {offsets = [0, 64], sizes = [1, 32], strides = [1, 1]} : vector<1x128xf32> to vector<1x32xf32>
    %768 = vector.extract_strided_slice %764 {offsets = [0, 96], sizes = [1, 32], strides = [1, 1]} : vector<1x128xf32> to vector<1x32xf32>
    %769 = arith.mulf %766, %767 : vector<1x32xf32>
    %770 = math.tanh %769 : vector<1x32xf32>
    %771 = arith.mulf %768, %770 : vector<1x32xf32>
    %772 = arith.truncf %771 : vector<1x32xf32> to vector<1x32xbf16>
    %773 = arith.index_cast %723 : i32 to index
    %c0_195 = arith.constant 0 : index
    %c0_196 = arith.constant 0 : index
    %774 = vector.load %arg6[%773, %c0_195, %c0_196] : memref<3x32x256xbf16, #tpu.memory_space<vmem>>, vector<1x32x256xbf16>
    %775 = vector.shape_cast %774 : vector<1x32x256xbf16> to vector<32x256xbf16>
    %cst_197 = arith.constant dense<0.000000e+00> : vector<1x256xf32>
    %776 = tpu.matmul %772, %775, %cst_197 {dimension_numbers = #tpu.dot_dimension_numbers<[1], [0], [0], [1], [0, 0, 1, 1], [], []>} : vector<1x32xbf16>, vector<32x256xbf16>, vector<1x256xf32> -> vector<1x256xf32>
    %777 = arith.index_cast %723 : i32 to index
    %c0_198 = arith.constant 0 : index
    %c0_199 = arith.constant 0 : index
    %778 = vector.load %arg5[%777, %c0_198, %c0_199] : memref<3x1x256xf32, #tpu.memory_space<vmem>>, vector<1x1x256xf32>
    %779 = vector.shape_cast %778 : vector<1x1x256xf32> to vector<1x256xf32>
    %780 = arith.addf %776, %779 : vector<1x256xf32>
    %781 = vector.extract_strided_slice %780 {offsets = [0, 0], sizes = [1, 128], strides = [1, 1]} : vector<1x256xf32> to vector<1x128xf32>
    %782 = vector.extract_strided_slice %780 {offsets = [0, 128], sizes = [1, 128], strides = [1, 1]} : vector<1x256xf32> to vector<1x128xf32>
    %cst_200 = arith.constant dense<0xFF800000> : vector<1xf32>
    %783 = vector.multi_reduction <maximumf>, %781, %cst_200 [1] : vector<1x128xf32> to vector<1xf32>
    %784 = vector.shape_cast %783 : vector<1xf32> to vector<1x1xf32>
    %785 = vector.broadcast %784 : vector<1x1xf32> to vector<1x128xf32>
    %786 = arith.subf %781, %785 : vector<1x128xf32>
    %787 = math.exp %786 : vector<1x128xf32>
    %cst_201 = arith.constant dense<0.000000e+00> : vector<1xf32>
    %788 = vector.multi_reduction <add>, %787, %cst_201 [1] : vector<1x128xf32> to vector<1xf32>
    %789 = vector.shape_cast %788 : vector<1xf32> to vector<1x1xf32>
    %790 = vector.broadcast %789 : vector<1x1xf32> to vector<1x128xf32>
    %791 = arith.divf %787, %790 : vector<1x128xf32>
    %792 = vector.broadcast %784 : vector<1x1xf32> to vector<1x128xf32>
    %793 = arith.cmpf oeq, %781, %792 : vector<1x128xf32>
    %c128_i32_202 = arith.constant 128 : i32
    %794 = vector.broadcast %c128_i32_202 : i32 to vector<1x128xi32>
    %795 = arith.select %793, %3, %794 : vector<1x128xi1>, vector<1x128xi32>
    %cst_203 = arith.constant dense<2147483647> : vector<1xi32>
    %796 = vector.multi_reduction <minsi>, %795, %cst_203 [1] : vector<1x128xi32> to vector<1xi32>
    %797 = vector.shape_cast %796 : vector<1xi32> to vector<1x1xi32>
    %798 = vector.broadcast %797 : vector<1x1xi32> to vector<1x128xi32>
    %799 = arith.cmpi eq, %3, %798 : vector<1x128xi32>
    %800 = arith.extui %799 : vector<1x128xi1> to vector<1x128xi32>
    %801 = arith.sitofp %800 : vector<1x128xi32> to vector<1x128xf32>
    %802 = arith.mulf %782, %801 : vector<1x128xf32>
    %cst_204 = arith.constant dense<0.000000e+00> : vector<1xf32>
    %803 = vector.multi_reduction <add>, %802, %cst_204 [1] : vector<1x128xf32> to vector<1xf32>
    %804 = vector.shape_cast %803 : vector<1xf32> to vector<1x1xf32>
    %805 = vector.broadcast %721 : i32 to vector<1x128xi32>
    %806 = arith.cmpi eq, %4, %805 : vector<1x128xi32>
    %807 = vector.shape_cast %804 : vector<1x1xf32> to vector<1x1xf32>
    %808 = vector.broadcast %807 : vector<1x1xf32> to vector<1x128xf32>
    %809 = arith.select %806, %808, %707 : vector<1x128xi1>, vector<1x128xf32>
    %c8_i32_205 = arith.constant 8 : i32
    %810 = vector.broadcast %c8_i32_205 : i32 to vector<1x128xi32>
    %811 = arith.cmpi eq, %3, %810 : vector<1x128xi32>
    %812 = vector.shape_cast %804 : vector<1x1xf32> to vector<1x1xf32>
    %813 = vector.broadcast %812 : vector<1x1xf32> to vector<1x128xf32>
    %814 = arith.select %811, %813, %791 : vector<1x128xi1>, vector<1x128xf32>
    %c9_i32_206 = arith.constant 9 : i32
    %815 = vector.broadcast %c9_i32_206 : i32 to vector<1x128xi32>
    %816 = arith.cmpi eq, %3, %815 : vector<1x128xi32>
    %817 = arith.sitofp %797 : vector<1x1xi32> to vector<1x1xf32>
    %818 = vector.shape_cast %817 : vector<1x1xf32> to vector<1x1xf32>
    %819 = vector.broadcast %818 : vector<1x1xf32> to vector<1x128xf32>
    %820 = arith.select %816, %819, %814 : vector<1x128xi1>, vector<1x128xf32>
    %c7 = arith.constant 7 : index
    %c0_207 = arith.constant 0 : index
    %821 = vector.load %arg7[%c7, %c0_207] : memref<8x128xf32, #tpu.memory_space<vmem>>, vector<1x128xf32>
    tpu.vector_store %arg7[%c7, %c0_207], %820 {strides = array<i32>} : memref<8x128xf32, #tpu.memory_space<vmem>>, vector<1x128xf32>,
    %c0_208 = arith.constant 0 : index
    %c0_209 = arith.constant 0 : index
    %822 = vector.load %arg8[%c0_208, %c0_209] : memref<1x128xf32, #tpu.memory_space<vmem>>, vector<1x128xf32>
    tpu.vector_store %arg8[%c0_208, %c0_209], %809 {strides = array<i32>} : memref<1x128xf32, #tpu.memory_space<vmem>>, vector<1x128xf32>,
    return
  }
  func.func @transform_0(%arg0: i32, %arg1: memref<8xi32, #tpu.memory_space<smem>>, %arg2: memref<16xi32, #tpu.memory_space<smem>>) -> (i32, i32, i32) {
    %c0_i32 = arith.constant 0 : i32
    %c0_i32_0 = arith.constant 0 : i32
    %c0_i32_1 = arith.constant 0 : i32
    %c0_i32_2 = arith.constant 0 : i32
    return %c0_i32, %c0_i32_0, %c0_i32_1 : i32, i32, i32
  }
  func.func @transform_1(%arg0: i32, %arg1: memref<8xi32, #tpu.memory_space<smem>>, %arg2: memref<16xi32, #tpu.memory_space<smem>>) -> (i32, i32, i32) {
    %c0_i32 = arith.constant 0 : i32
    %c0_i32_0 = arith.constant 0 : i32
    %c0_i32_1 = arith.constant 0 : i32
    %c0_i32_2 = arith.constant 0 : i32
    return %c0_i32, %c0_i32_0, %c0_i32_1 : i32, i32, i32
  }
  func.func @transform_2(%arg0: i32, %arg1: memref<8xi32, #tpu.memory_space<smem>>, %arg2: memref<16xi32, #tpu.memory_space<smem>>) -> (i32, i32, i32) {
    %c0_i32 = arith.constant 0 : i32
    %c0_i32_0 = arith.constant 0 : i32
    %c0_i32_1 = arith.constant 0 : i32
    %c0_i32_2 = arith.constant 0 : i32
    return %c0_i32, %c0_i32_0, %c0_i32_1 : i32, i32, i32
  }
  func.func @transform_3(%arg0: i32, %arg1: memref<8xi32, #tpu.memory_space<smem>>, %arg2: memref<16xi32, #tpu.memory_space<smem>>) -> (i32, i32, i32) {
    %c0_i32 = arith.constant 0 : i32
    %c0_i32_0 = arith.constant 0 : i32
    %c0_i32_1 = arith.constant 0 : i32
    %c0_i32_2 = arith.constant 0 : i32
    return %c0_i32, %c0_i32_0, %c0_i32_1 : i32, i32, i32
  }
  func.func @transform_4(%arg0: i32, %arg1: memref<8xi32, #tpu.memory_space<smem>>, %arg2: memref<16xi32, #tpu.memory_space<smem>>) -> (i32, i32) {
    %c0_i32 = arith.constant 0 : i32
    %c0_i32_0 = arith.constant 0 : i32
    return %arg0, %c0_i32 : i32, i32
  }
}

</mosaic_0001>

<llo_original>
// kernel: _fused_tree_forward.1
$region0: #{_fused_tree_forward.1}
  #allocation0 [shape = 'u32[]', space=smem, size = 0x4, offset = 0x4, fixed_abs, tag = 'smem constant byte address 0x4 - core index']
  #allocation1 [shape = 'u32[144,128]{1,0:T(1,128)}', space=vmem, size = 0x12000, scoped, tag = 'internal scratch']
  #allocation2 [shape = 'f32[1,128]{1,0:T(1,128)}', space=vmem, size = 0x200, scoped, tag = 'scratch operand']
  #allocation3 [shape = 's32[1]{0}', space=sflag, size = 0x4, scoped, tag = 'scoped memory for _fused_tree_forward.1']
  #allocation4 [shape = 'u8[512]{0}', space=smem, size = 0x200, scoped, tag = 'prefetched SMEM operand 0']
  #allocation5 [shape = 'u8[512]{0}', space=smem, size = 0x200, scoped, tag = 'prefetched SMEM operand 1']
  %s0 = inlined_call_operand.vmem [shape: s32[8], index: 0, kind: input, shape index: {}]
  %s1 = inlined_call_operand.vmem [shape: s32[16], index: 1, kind: input, shape index: {}]
  %s2 = inlined_call_operand.vmem [shape: f32[3,1,128], index: 2, kind: input, shape index: {}]
  %s3 = inlined_call_operand.vmem [shape: f32[3,1,128], index: 3, kind: input, shape index: {}]
  %s4 = inlined_call_operand.vmem [shape: f32[3,1,256], index: 4, kind: input, shape index: {}]
  %s5 = inlined_call_operand.vmem [shape: bf16[3,32,256], index: 5, kind: input, shape index: {}]
  %s6 = inlined_call_operand.hbm [shape: f32[8,128], index: 6, kind: output, shape index: {}]
  %s7 = sld [smem:[#allocation0]]
  $region30: #{_fused_tree_forward.1} parent=0
    _
  %s9 = ssub.s32 1, %s7
  %s10 = scalar_select 0, %s9, %s7
  %s11 = sshll.u32 %s0, 4
  %s12 = int_to_ptr.vmem [resolvable:$true] %s11
  %14 = dma.vmem_to_smem %s12, 16, [#allocation4], [#allocation3]
  %s15 = sshll.u32 %s1, 4
  %s16 = int_to_ptr.vmem [resolvable:$true] %s15
  %18 = dma.vmem_to_smem %s16, 16, [#allocation5], [#allocation3]
  %19 = dma.done [#allocation3], 32
  %20 = sfence
  $region1: #{_fused_tree_forward.1} parent=0
    #allocation6 [shape = 'u8[4096]{0}', space=vmem, size = 0x1000, scoped, tag = 'output window, operand 0, single buffered']
    #allocation7 [shape = 's32[1]{0}', space=sflag, size = 0x4, scoped, tag = 'scoped memory for _fused_tree_forward.1']
    %21 = vsyncpa [#allocation7], 0
    // Predicated region
    $region2: #{_fused_tree_forward.1} parent=1 // pred_check
      _
    $region3: #{_fused_tree_forward.1} parent=1 // pred_check_branch
      %23 = sbr.rel (0) target = $region5
    $region4: #{_fused_tree_forward.1} parent=1 // pred_region
      _
    $region5: #{_fused_tree_forward.1} parent=1 // pred_fallthru
      _
    // Predicated region
    $region6: #{_fused_tree_forward.1} parent=1 // pred_check
      _
    $region7: #{_fused_tree_forward.1} parent=1 // pred_check_branch
      %25 = sbr.rel (0) target = $region9
    $region8: #{_fused_tree_forward.1} parent=1 // pred_region
      _
    $region9: #{_fused_tree_forward.1} parent=1 // pred_fallthru
      _
    // Predicated region
    $region10: #{_fused_tree_forward.1} parent=1 // pred_check
      _
    $region11: #{_fused_tree_forward.1} parent=1 // pred_check_branch
      %27 = sbr.rel (0) target = $region13
    $region12: #{_fused_tree_forward.1} parent=1 // pred_region
      _
    $region13: #{_fused_tree_forward.1} parent=1 // pred_fallthru
      _
    // Predicated region
    $region14: #{_fused_tree_forward.1} parent=1 // pred_check
      _
    $region15: #{_fused_tree_forward.1} parent=1 // pred_check_branch
      %29 = sbr.rel (0) target = $region17
    $region16: #{_fused_tree_forward.1} parent=1 // pred_region
      _
    $region17: #{_fused_tree_forward.1} parent=1 // pred_fallthru
      _
    %p31 = scmp.eq.s32.totalorder 0, 0
    // Predicated region
    $region18: #{_fused_tree_forward.1} parent=1 // pred_check
      %p32 = pneg %p31
    $region19: #{_fused_tree_forward.1} parent=1 // pred_check_branch
      %34 = sbr.rel (%p32) target = $region21
    $region20: #{_fused_tree_forward.1} parent=1 // pred_region
      %35 = vst [vmem:[#allocation2] sm:$0x1] 0.0
    $region21: #{_fused_tree_forward.1} parent=1 // pred_fallthru
      _
    %v36 = vlaneseq
    %v37 = vand.u32 %v36, 127
    %v38 = vld [vmem:[#allocation2] sm:$0x1]
    %s39 = smul.u32 0, 8
    %s40 = sld [smem:[#allocation4 + %s39]]
    %s41 = smul.u32 0, 16
    %s42 = sld [smem:[#allocation5 + %s41]]
    %v43 = vstv %s42
    %vm44 = vcmp.eq.s32.totalorder %v37, %v43
    %v45 = vsel %vm44, 1, 0
    %v46 = vcvt.s32.f32 %v45
    %s47 = sadd.s32 %s41, 1
    %s48 = sld [smem:[#allocation5 + %s47]]
    %v49 = vstv %s48
    %vm50 = vcmp.eq.s32.totalorder %v37, %v49
    %v51 = vsel %vm50, 1, 0
    %v52 = vcvt.s32.f32 %v51
    %v53 = vadd.f32 %v46, %v52
    %54 = vadd.xlane.f32.xlu0 %v53
    %v55 = vpop.xlane.xlu0 %54
    %vm56 = vcmp.gt.f32.partialorder %v55, 0.0
    %v57 = vmul.f32 %v38, %v53
    %vm58 = vcmask 1040384
    %v59 = vsel %vm58, %v57, 0.0
    %60 = vadd.xlane.f32.xlu0 %v59
    %v61 = vpop.xlane.xlu0 %60
    %v62 = vmax.f32 %v55, 1.0
    %v63 = vrcp.pop %v62
    %v64 = vmul.f32 %v61, %v63
    %v65 = vsel %vm56, %v64, 0.0
    %s66 = scalar_lea.vmem %s2, %s40
    %v67 = vld [vmem:[%s66] sm:$0x1]
    %s68 = scalar_lea.vmem %s3, %s40
    %v69 = vld [vmem:[%s68] sm:$0x1]
    %v70 = vmul.f32 %v65, %v69
    %v71 = vadd.f32 %v67, %v70
    %v72 = vxor.u32 %v71, 2147483648
    %v73 = vmul.f32 %v72, 1.442695
    %v74 = vpow.pop %v73
    %v75 = vadd.f32 %v74, 1.0
    %v76 = vrcp.pop %v75
    %v77 = vmul.f32 1.0, %v76
    %v78 = vtanh.pop %v71
    %80 = vrot.lane.b32.xlu0 %v78, 64
    %v81 = vpop.permute.xlu0 %80
    %v83 = vmul.f32 %v77, %v81
    %v84 = vtanh.pop %v83
    %86 = vrot.lane.b32.xlu0 %v84, 96
    %v87 = vpop.permute.xlu0 %86
    %v89 = vmul.f32 %v77, %v87
    %v90 = vpack.c.bf16 %v89, %v89
    %s91 = smul.u32 %s40, 8
    %s92 = smul.addr %s91, 4
    %s93 = scalar_lea.vmem %s5, %s92
    %v94 = vld [vmem:[%s93] sm:$0xff]
    %v95 = vld [vmem:[%s93 + $0x8] sm:$0xff]
    %v96 = vld [vmem:[%s93 + $0x10] sm:$0xff]
    %v97 = vld [vmem:[%s93 + $0x18] sm:$0xff]
    %s98 = smul.u32 %s40, 2
    %s99 = scalar_lea.vmem %s4, %s98
    %v100 = vld [vmem:[%s99] sm:$0x3]
    %102 = vrot.lane.b32.xlu0 %v90, 32
    %v103 = vpop.permute.xlu0 %102
    %v108 = vunpack.c.l.b16 %v94
    %v109 = vunpack.c.h.b16 %v94
    %v110 = vunpack.c.l.b16 %v95
    %v111 = vunpack.c.h.b16 %v95
    %v112 = vunpack.c.l.b16 %v96
    %v113 = vunpack.c.h.b16 %v96
    %v114 = vunpack.c.l.b16 %v97
    %v115 = vunpack.c.h.b16 %v97
    %v116 = vpack.c.b16 %v110, %v108
    %v117 = vpack.c.b16 %v111, %v109
    %v118 = vpack.c.b16 %v114, %v112
    %v119 = vpack.c.b16 %v115, %v113
    %v125 = vlaneseq
    %v126 = vshrl.u32 %v125, 7
    %v127 = vsub.s32 0, %v126
    %v128 = vrot.slane %v100, %v127
    %v129 = vlaneseq
    %v130 = vshrl.u32 %v129, 7
    %v131 = vsub.s32 1, %v130
    %v132 = vrot.slane %v100, %v131
    %vm135 = vcmask 261120
    %v137 = vsel %vm135, %v103, 0
    %139 = vmatprep.subr.bf16.mxu0 %v117
    %140 = vmatpush1.bf16.msra.mxu0 %v116
    %141 = vmatprep.subr.bf16.mxu0 %v119
    %142 = vmatpush1.bf16.msra.mxu0 %v118
    %143 = vmatprep.subr.bf16.mxu0 0
    %144 = vmatpush1.bf16.msra.mxu0 0
    %145 = vmatprep.subr.bf16.mxu0 0
    %146 = vmatpush1.bf16.msra.mxu0 0
    %147 = vmatprep.subr.bf16.mxu0 0
    %148 = vmatpush1.bf16.msra.mxu0 0
    %149 = vmatprep.subr.bf16.mxu0 0
    %150 = vmatpush1.bf16.msra.mxu0 0
    %151 = vmatprep.subr.bf16.mxu0 0
    %152 = vmatpush1.bf16.msra.mxu0 0
    %153 = vmatprep.subr.bf16.mxu0 0
    %154 = vmatpush1.bf16.msra.mxu0 0
    %155 = vmatprep.subr.bf16.mxu0 0
    %156 = vmatpush1.bf16.msra.mxu0 0
    %157 = vmatprep.subr.bf16.mxu0 0
    %158 = vmatpush1.bf16.msra.mxu0 0
    %159 = vmatprep.subr.bf16.mxu0 0
    %160 = vmatpush1.bf16.msra.mxu0 0
    %161 = vmatprep.subr.bf16.mxu0 0
    %162 = vmatpush1.bf16.msra.mxu0 0
    %163 = vmatprep.subr.bf16.mxu0 0
    %164 = vmatpush1.bf16.msra.mxu0 0
    %165 = vmatprep.subr.bf16.mxu0 0
    %166 = vmatpush1.bf16.msra.mxu0 0
    %167 = vmatprep.subr.bf16.mxu0 0
    %168 = vmatpush1.bf16.msra.mxu0 0
    %169 = vmatprep.subr.bf16.mxu0 0
    %170 = vmatpush1.bf16.msra.mxu0 0
    %171 = vmatprep.mubr.bf16.mxu0 0
    %172 = vmatmul.mubr.bf16.gmra.mrb[0].mxu0 %v137
    %v173 = vpop.f32.mrb[0].mxu0
    %v174 = vadd.f32 %v128, %v173
    %v175 = vpop.f32.mrb[0].mxu0
    %v176 = vadd.f32 %v132, %v175
    %v177 = vpop.f32.mrb[0].mxu0
    %v178 = vpop.f32.mrb[0].mxu0
    %179 = vdwg.mxu0
    %v180 = vsel %vm58, %v174, -inf
    %181 = vmax.xlane.f32.xlu0 %v180
    %v182 = vpop.xlane.xlu0 %181
    %v183 = vsub.f32 %v174, %v182
    %v184 = vmul.f32 %v183, 1.442695
    %v185 = vpow.pop %v184
    %v186 = vsel %vm58, %v185, 0.0
    %187 = vadd.xlane.f32.xlu0 %v186
    %v188 = vpop.xlane.xlu0 %187
    %v189 = vrcp.pop %v188
    %v190 = vmul.f32 %v185, %v189
    %vm191 = vcmp.eq.f32.partialorder %v174, %v182
    %v192 = vsel %vm191, %v37, 128
    %v193 = vsel %vm58, %v192, 2147483647
    %v194 = vand.u32 %v193, 65535
    %v195 = vshra.s32 %v193, 16
    %v196 = vcvt.s32.f32 %v194
    %v197 = vcvt.s32.f32 %v195
    %198 = vmin.xlane.f32.xlu0 %v197
    %v199 = vpop.xlane.xlu0 %198
    %vm200 = vcmp.eq.f32.partialorder %v197, %v199
    %v201 = vsel %vm200, %v196, inf
    %202 = vmin.xlane.f32.xlu0 %v201
    %v203 = vpop.xlane.xlu0 %202
    %v204 = vcvt.f32.s32 %v203
    %v205 = vcvt.f32.s32 %v199
    %v206 = vshll.u32 %v205, 16
    %v207 = vadd.s32 %v206, %v204
    %vm208 = vcmp.eq.s32.totalorder %v37, %v207
    %v209 = vsel %vm208, 1, 0
    %v210 = vcvt.s32.f32 %v209
    %v211 = vmul.f32 %v176, %v210
    %v212 = vsel %vm58, %v211, 0.0
    %213 = vadd.xlane.f32.xlu0 %v212
    %v214 = vpop.xlane.xlu0 %213
    %v215 = vstv %s39
    %vm216 = vcmp.eq.s32.totalorder %v37, %v215
    %v217 = vsel %vm216, %v214, %v38
    %vm218 = vcmp.eq.s32.totalorder %v37, 8
    %v219 = vsel %vm218, %v214, %v190
    %vm220 = vcmp.eq.s32.totalorder %v37, 9
    %v221 = vcvt.s32.f32 %v207
    %v222 = vsel %vm220, %v221, %v219
    %223 = vst [vmem:[#allocation6] sm:$0x1] %v222
    %s224 = sadd.s32 %s39, 1
    %s225 = sld [smem:[#allocation4 + %s224]]
    %s226 = smul.u32 %s224, 2
    %s227 = sld [smem:[#allocation5 + %s226]]
    %v228 = vstv %s227
    %vm229 = vcmp.eq.s32.totalorder %v37, %v228
    %v230 = vsel %vm229, 1, 0
    %v231 = vcvt.s32.f32 %v230
    %s232 = sadd.s32 %s226, 1
    %s233 = sld [smem:[#allocation5 + %s232]]
    %v234 = vstv %s233
    %vm235 = vcmp.eq.s32.totalorder %v37, %v234
    %v236 = vsel %vm235, 1, 0
    %v237 = vcvt.s32.f32 %v236
    %v238 = vadd.f32 %v231, %v237
    %239 = vadd.xlane.f32.xlu0 %v238
    %v240 = vpop.xlane.xlu0 %239
    %vm241 = vcmp.gt.f32.partialorder %v240, 0.0
    %v242 = vmul.f32 %v217, %v238
    %v243 = vsel %vm58, %v242, 0.0
    %244 = vadd.xlane.f32.xlu0 %v243
    %v245 = vpop.xlane.xlu0 %244
    %v246 = vmax.f32 %v240, 1.0
    %v247 = vrcp.pop %v246
    %v248 = vmul.f32 %v245, %v247
    %v249 = vsel %vm241, %v248, 0.0
    %s250 = scalar_lea.vmem %s2, %s225
    %v251 = vld [vmem:[%s250] sm:$0x1]
    %s252 = scalar_lea.vmem %s3, %s225
    %v253 = vld [vmem:[%s252] sm:$0x1]
    %v254 = vmul.f32 %v249, %v253
    %v255 = vadd.f32 %v251, %v254
    %v256 = vxor.u32 %v255, 2147483648
    %v257 = vmul.f32 %v256, 1.442695
    %v258 = vpow.pop %v257
    %v259 = vadd.f32 %v258, 1.0
    %v260 = vrcp.pop %v259
    %v261 = vmul.f32 1.0, %v260
    %v262 = vtanh.pop %v255
    %264 = vrot.lane.b32.xlu0 %v262, 64
    %v265 = vpop.permute.xlu0 %264
    %v267 = vmul.f32 %v261, %v265
    %v268 = vtanh.pop %v267
    %270 = vrot.lane.b32.xlu0 %v268, 96
    %v271 = vpop.permute.xlu0 %270
    %v273 = vmul.f32 %v261, %v271
    %v274 = vpack.c.bf16 %v273, %v273
    %s275 = smul.u32 %s225, 8
    %s276 = smul.addr %s275, 4
    %s277 = scalar_lea.vmem %s5, %s276
    %v278 = vld [vmem:[%s277] sm:$0xff]
    %v279 = vld [vmem:[%s277 + $0x8] sm:$0xff]
    %v280 = vld [vmem:[%s277 + $0x10] sm:$0xff]
    %v281 = vld [vmem:[%s277 + $0x18] sm:$0xff]
    %s282 = smul.u32 %s225, 2
    %s283 = scalar_lea.vmem %s4, %s282
    %v284 = vld [vmem:[%s283] sm:$0x3]
    %286 = vrot.lane.b32.xlu0 %v274, 32
    %v287 = vpop.permute.xlu0 %286
    %v292 = vunpack.c.l.b16 %v278
    %v293 = vunpack.c.h.b16 %v278
    %v294 = vunpack.c.l.b16 %v279
    %v295 = vunpack.c.h.b16 %v279
    %v296 = vunpack.c.l.b16 %v280
    %v297 = vunpack.c.h.b16 %v280
    %v298 = vunpack.c.l.b16 %v281
    %v299 = vunpack.c.h.b16 %v281
    %v300 = vpack.c.b16 %v294, %v292
    %v301 = vpack.c.b16 %v295, %v293
    %v302 = vpack.c.b16 %v298, %v296
    %v303 = vpack.c.b16 %v299, %v297
    %v309 = vlaneseq
    %v310 = vshrl.u32 %v309, 7
    %v311 = vsub.s32 0, %v310
    %v312 = vrot.slane %v284, %v311
    %v313 = vlaneseq
    %v314 = vshrl.u32 %v313, 7
    %v315 = vsub.s32 1, %v314
    %v316 = vrot.slane %v284, %v315
    %v320 = vsel %vm135, %v287, 0
    %322 = vmatprep.subr.bf16.mxu0 %v301
    %323 = vmatpush1.bf16.msra.mxu0 %v300
    %324 = vmatprep.subr.bf16.mxu0 %v303
    %325 = vmatpush1.bf16.msra.mxu0 %v302
    %326 = vmatprep.subr.bf16.mxu0 0
    %327 = vmatpush1.bf16.msra.mxu0 0
    %328 = vmatprep.subr.bf16.mxu0 0
    %329 = vmatpush1.bf16.msra.mxu0 0
    %330 = vmatprep.subr.bf16.mxu0 0
    %331 = vmatpush1.bf16.msra.mxu0 0
    %332 = vmatprep.subr.bf16.mxu0 0
    %333 = vmatpush1.bf16.msra.mxu0 0
    %334 = vmatprep.subr.bf16.mxu0 0
    %335 = vmatpush1.bf16.msra.mxu0 0
    %336 = vmatprep.subr.bf16.mxu0 0
    %337 = vmatpush1.bf16.msra.mxu0 0
    %338 = vmatprep.subr.bf16.mxu0 0
    %339 = vmatpush1.bf16.msra.mxu0 0
    %340 = vmatprep.subr.bf16.mxu0 0
    %341 = vmatpush1.bf16.msra.mxu0 0
    %342 = vmatprep.subr.bf16.mxu0 0
    %343 = vmatpush1.bf16.msra.mxu0 0
    %344 = vmatprep.subr.bf16.mxu0 0
    %345 = vmatpush1.bf16.msra.mxu0 0
    %346 = vmatprep.subr.bf16.mxu0 0
    %347 = vmatpush1.bf16.msra.mxu0 0
    %348 = vmatprep.subr.bf16.mxu0 0
    %349 = vmatpush1.bf16.msra.mxu0 0
    %350 = vmatprep.subr.bf16.mxu0 0
    %351 = vmatpush1.bf16.msra.mxu0 0
    %352 = vmatprep.subr.bf16.mxu0 0
    %353 = vmatpush1.bf16.msra.mxu0 0
    %354 = vmatprep.mubr.bf16.mxu0 0
    %355 = vmatmul.mubr.bf16.gmra.mrb[0].mxu0 %v320
    %v356 = vpop.f32.mrb[0].mxu0
    %v357 = vadd.f32 %v312, %v356
    %v358 = vpop.f32.mrb[0].mxu0
    %v359 = vadd.f32 %v316, %v358
    %v360 = vpop.f32.mrb[0].mxu0
    %v361 = vpop.f32.mrb[0].mxu0
    %362 = vdwg.mxu0
    %v363 = vsel %vm58, %v357, -inf
    %364 = vmax.xlane.f32.xlu0 %v363
    %v365 = vpop.xlane.xlu0 %364
    %v366 = vsub.f32 %v357, %v365
    %v367 = vmul.f32 %v366, 1.442695
    %v368 = vpow.pop %v367
    %v369 = vsel %vm58, %v368, 0.0
    %370 = vadd.xlane.f32.xlu0 %v369
    %v371 = vpop.xlane.xlu0 %370
    %v372 = vrcp.pop %v371
    %v373 = vmul.f32 %v368, %v372
    %vm374 = vcmp.eq.f32.partialorder %v357, %v365
    %v375 = vsel %vm374, %v37, 128
    %v376 = vsel %vm58, %v375, 2147483647
    %v377 = vand.u32 %v376, 65535
    %v378 = vshra.s32 %v376, 16
    %v379 = vcvt.s32.f32 %v377
    %v380 = vcvt.s32.f32 %v378
    %381 = vmin.xlane.f32.xlu0 %v380
    %v382 = vpop.xlane.xlu0 %381
    %vm383 = vcmp.eq.f32.partialorder %v380, %v382
    %v384 = vsel %vm383, %v379, inf
    %385 = vmin.xlane.f32.xlu0 %v384
    %v386 = vpop.xlane.xlu0 %385
    %v387 = vcvt.f32.s32 %v386
    %v388 = vcvt.f32.s32 %v382
    %v389 = vshll.u32 %v388, 16
    %v390 = vadd.s32 %v389, %v387
    %vm391 = vcmp.eq.s32.totalorder %v37, %v390
    %v392 = vsel %vm391, 1, 0
    %v393 = vcvt.s32.f32 %v392
    %v394 = vmul.f32 %v359, %v393
    %v395 = vsel %vm58, %v394, 0.0
    %396 = vadd.xlane.f32.xlu0 %v395
    %v397 = vpop.xlane.xlu0 %396
    %v398 = vstv %s224
    %vm399 = vcmp.eq.s32.totalorder %v37, %v398
    %v400 = vsel %vm399, %v397, %v217
    %v401 = vsel %vm218, %v397, %v373
    %v402 = vcvt.s32.f32 %v390
    %v403 = vsel %vm220, %v402, %v401
    %404 = vst [vmem:[#allocation6 + $0x1] sm:$0x1] %v403
    %s405 = sadd.s32 %s39, 2
    %s406 = sld [smem:[#allocation4 + %s405]]
    %s407 = smul.u32 %s405, 2
    %s408 = sld [smem:[#allocation5 + %s407]]
    %v409 = vstv %s408
    %vm410 = vcmp.eq.s32.totalorder %v37, %v409
    %v411 = vsel %vm410, 1, 0
    %v412 = vcvt.s32.f32 %v411
    %s413 = sadd.s32 %s407, 1
    %s414 = sld [smem:[#allocation5 + %s413]]
    %v415 = vstv %s414
    %vm416 = vcmp.eq.s32.totalorder %v37, %v415
    %v417 = vsel %vm416, 1, 0
    %v418 = vcvt.s32.f32 %v417
    %v419 = vadd.f32 %v412, %v418
    %420 = vadd.xlane.f32.xlu0 %v419
    %v421 = vpop.xlane.xlu0 %420
    %vm422 = vcmp.gt.f32.partialorder %v421, 0.0
    %v423 = vmul.f32 %v400, %v419
    %v424 = vsel %vm58, %v423, 0.0
    %425 = vadd.xlane.f32.xlu0 %v424
    %v426 = vpop.xlane.xlu0 %425
    %v427 = vmax.f32 %v421, 1.0
    %v428 = vrcp.pop %v427
    %v429 = vmul.f32 %v426, %v428
    %v430 = vsel %vm422, %v429, 0.0
    %s431 = scalar_lea.vmem %s2, %s406
    %v432 = vld [vmem:[%s431] sm:$0x1]
    %s433 = scalar_lea.vmem %s3, %s406
    %v434 = vld [vmem:[%s433] sm:$0x1]
    %v435 = vmul.f32 %v430, %v434
    %v436 = vadd.f32 %v432, %v435
    %v437 = vxor.u32 %v436, 2147483648
    %v438 = vmul.f32 %v437, 1.442695
    %v439 = vpow.pop %v438
    %v440 = vadd.f32 %v439, 1.0
    %v441 = vrcp.pop %v440
    %v442 = vmul.f32 1.0, %v441
    %v443 = vtanh.pop %v436
    %445 = vrot.lane.b32.xlu0 %v443, 64
    %v446 = vpop.permute.xlu0 %445
    %v448 = vmul.f32 %v442, %v446
    %v449 = vtanh.pop %v448
    %451 = vrot.lane.b32.xlu0 %v449, 96
    %v452 = vpop.permute.xlu0 %451
    %v454 = vmul.f32 %v442, %v452
    %v455 = vpack.c.bf16 %v454, %v454
    %s456 = smul.u32 %s406, 8
    %s457 = smul.addr %s456, 4
    %s458 = scalar_lea.vmem %s5, %s457
    %v459 = vld [vmem:[%s458] sm:$0xff]
    %v460 = vld [vmem:[%s458 + $0x8] sm:$0xff]
    %v461 = vld [vmem:[%s458 + $0x10] sm:$0xff]
    %v462 = vld [vmem:[%s458 + $0x18] sm:$0xff]
    %s463 = smul.u32 %s406, 2
    %s464 = scalar_lea.vmem %s4, %s463
    %v465 = vld [vmem:[%s464] sm:$0x3]
    %467 = vrot.lane.b32.xlu0 %v455, 32
    %v468 = vpop.permute.xlu0 %467
    %v473 = vunpack.c.l.b16 %v459
    %v474 = vunpack.c.h.b16 %v459
    %v475 = vunpack.c.l.b16 %v460
    %v476 = vunpack.c.h.b16 %v460
    %v477 = vunpack.c.l.b16 %v461
    %v478 = vunpack.c.h.b16 %v461
    %v479 = vunpack.c.l.b16 %v462
    %v480 = vunpack.c.h.b16 %v462
    %v481 = vpack.c.b16 %v475, %v473
    %v482 = vpack.c.b16 %v476, %v474
    %v483 = vpack.c.b16 %v479, %v477
    %v484 = vpack.c.b16 %v480, %v478
    %v490 = vlaneseq
    %v491 = vshrl.u32 %v490, 7
    %v492 = vsub.s32 0, %v491
    %v493 = vrot.slane %v465, %v492
    %v494 = vlaneseq
    %v495 = vshrl.u32 %v494, 7
    %v496 = vsub.s32 1, %v495
    %v497 = vrot.slane %v465, %v496
    %v501 = vsel %vm135, %v468, 0
    %503 = vmatprep.subr.bf16.mxu0 %v482
    %504 = vmatpush1.bf16.msra.mxu0 %v481
    %505 = vmatprep.subr.bf16.mxu0 %v484
    %506 = vmatpush1.bf16.msra.mxu0 %v483
    %507 = vmatprep.subr.bf16.mxu0 0
    %508 = vmatpush1.bf16.msra.mxu0 0
    %509 = vmatprep.subr.bf16.mxu0 0
    %510 = vmatpush1.bf16.msra.mxu0 0
    %511 = vmatprep.subr.bf16.mxu0 0
    %512 = vmatpush1.bf16.msra.mxu0 0
    %513 = vmatprep.subr.bf16.mxu0 0
    %514 = vmatpush1.bf16.msra.mxu0 0
    %515 = vmatprep.subr.bf16.mxu0 0
    %516 = vmatpush1.bf16.msra.mxu0 0
    %517 = vmatprep.subr.bf16.mxu0 0
    %518 = vmatpush1.bf16.msra.mxu0 0
    %519 = vmatprep.subr.bf16.mxu0 0
    %520 = vmatpush1.bf16.msra.mxu0 0
    %521 = vmatprep.subr.bf16.mxu0 0
    %522 = vmatpush1.bf16.msra.mxu0 0
    %523 = vmatprep.subr.bf16.mxu0 0
    %524 = vmatpush1.bf16.msra.mxu0 0
    %525 = vmatprep.subr.bf16.mxu0 0
    %526 = vmatpush1.bf16.msra.mxu0 0
    %527 = vmatprep.subr.bf16.mxu0 0
    %528 = vmatpush1.bf16.msra.mxu0 0
    %529 = vmatprep.subr.bf16.mxu0 0
    %530 = vmatpush1.bf16.msra.mxu0 0
    %531 = vmatprep.subr.bf16.mxu0 0
    %532 = vmatpush1.bf16.msra.mxu0 0
    %533 = vmatprep.subr.bf16.mxu0 0
    %534 = vmatpush1.bf16.msra.mxu0 0
    %535 = vmatprep.mubr.bf16.mxu0 0
    %536 = vmatmul.mubr.bf16.gmra.mrb[0].mxu0 %v501
    %v537 = vpop.f32.mrb[0].mxu0
    %v538 = vadd.f32 %v493, %v537
    %v539 = vpop.f32.mrb[0].mxu0
    %v540 = vadd.f32 %v497, %v539
    %v541 = vpop.f32.mrb[0].mxu0
    %v542 = vpop.f32.mrb[0].mxu0
    %543 = vdwg.mxu0
    %v544 = vsel %vm58, %v538, -inf
    %545 = vmax.xlane.f32.xlu0 %v544
    %v546 = vpop.xlane.xlu0 %545
    %v547 = vsub.f32 %v538, %v546
    %v548 = vmul.f32 %v547, 1.442695
    %v549 = vpow.pop %v548
    %v550 = vsel %vm58, %v549, 0.0
    %551 = vadd.xlane.f32.xlu0 %v550
    %v552 = vpop.xlane.xlu0 %551
    %v553 = vrcp.pop %v552
    %v554 = vmul.f32 %v549, %v553
    %vm555 = vcmp.eq.f32.partialorder %v538, %v546
    %v556 = vsel %vm555, %v37, 128
    %v557 = vsel %vm58, %v556, 2147483647
    %v558 = vand.u32 %v557, 65535
    %v559 = vshra.s32 %v557, 16
    %v560 = vcvt.s32.f32 %v558
    %v561 = vcvt.s32.f32 %v559
    %562 = vmin.xlane.f32.xlu0 %v561
    %v563 = vpop.xlane.xlu0 %562
    %vm564 = vcmp.eq.f32.partialorder %v561, %v563
    %v565 = vsel %vm564, %v560, inf
    %566 = vmin.xlane.f32.xlu0 %v565
    %v567 = vpop.xlane.xlu0 %566
    %v568 = vcvt.f32.s32 %v567
    %v569 = vcvt.f32.s32 %v563
    %v570 = vshll.u32 %v569, 16
    %v571 = vadd.s32 %v570, %v568
    %vm572 = vcmp.eq.s32.totalorder %v37, %v571
    %v573 = vsel %vm572, 1, 0
    %v574 = vcvt.s32.f32 %v573
    %v575 = vmul.f32 %v540, %v574
    %v576 = vsel %vm58, %v575, 0.0
    %577 = vadd.xlane.f32.xlu0 %v576
    %v578 = vpop.xlane.xlu0 %577
    %v579 = vstv %s405
    %vm580 = vcmp.eq.s32.totalorder %v37, %v579
    %v581 = vsel %vm580, %v578, %v400
    %v582 = vsel %vm218, %v578, %v554
    %v583 = vcvt.s32.f32 %v571
    %v584 = vsel %vm220, %v583, %v582
    %585 = vst [vmem:[#allocation6 + $0x2] sm:$0x1] %v584
    %s586 = sadd.s32 %s39, 3
    %s587 = sld [smem:[#allocation4 + %s586]]
    %s588 = smul.u32 %s586, 2
    %s589 = sld [smem:[#allocation5 + %s588]]
    %v590 = vstv %s589
    %vm591 = vcmp.eq.s32.totalorder %v37, %v590
    %v592 = vsel %vm591, 1, 0
    %v593 = vcvt.s32.f32 %v592
    %s594 = sadd.s32 %s588, 1
    %s595 = sld [smem:[#allocation5 + %s594]]
    %v596 = vstv %s595
    %vm597 = vcmp.eq.s32.totalorder %v37, %v596
    %v598 = vsel %vm597, 1, 0
    %v599 = vcvt.s32.f32 %v598
    %v600 = vadd.f32 %v593, %v599
    %601 = vadd.xlane.f32.xlu0 %v600
    %v602 = vpop.xlane.xlu0 %601
    %vm603 = vcmp.gt.f32.partialorder %v602, 0.0
    %v604 = vmul.f32 %v581, %v600
    %v605 = vsel %vm58, %v604, 0.0
    %606 = vadd.xlane.f32.xlu0 %v605
    %v607 = vpop.xlane.xlu0 %606
    %v608 = vmax.f32 %v602, 1.0
    %v609 = vrcp.pop %v608
    %v610 = vmul.f32 %v607, %v609
    %v611 = vsel %vm603, %v610, 0.0
    %s612 = scalar_lea.vmem %s2, %s587
    %v613 = vld [vmem:[%s612] sm:$0x1]
    %s614 = scalar_lea.vmem %s3, %s587
    %v615 = vld [vmem:[%s614] sm:$0x1]
    %v616 = vmul.f32 %v611, %v615
    %v617 = vadd.f32 %v613, %v616
    %v618 = vxor.u32 %v617, 2147483648
    %v619 = vmul.f32 %v618, 1.442695
    %v620 = vpow.pop %v619
    %v621 = vadd.f32 %v620, 1.0
    %v622 = vrcp.pop %v621
    %v623 = vmul.f32 1.0, %v622
    %v624 = vtanh.pop %v617
    %626 = vrot.lane.b32.xlu0 %v624, 64
    %v627 = vpop.permute.xlu0 %626
    %v629 = vmul.f32 %v623, %v627
    %v630 = vtanh.pop %v629
    %632 = vrot.lane.b32.xlu0 %v630, 96
    %v633 = vpop.permute.xlu0 %632
    %v635 = vmul.f32 %v623, %v633
    %v636 = vpack.c.bf16 %v635, %v635
    %s637 = smul.u32 %s587, 8
    %s638 = smul.addr %s637, 4
    %s639 = scalar_lea.vmem %s5, %s638
    %v640 = vld [vmem:[%s639] sm:$0xff]
    %v641 = vld [vmem:[%s639 + $0x8] sm:$0xff]
    %v642 = vld [vmem:[%s639 + $0x10] sm:$0xff]
    %v643 = vld [vmem:[%s639 + $0x18] sm:$0xff]
    %s644 = smul.u32 %s587, 2
    %s645 = scalar_lea.vmem %s4, %s644
    %v646 = vld [vmem:[%s645] sm:$0x3]
    %648 = vrot.lane.b32.xlu0 %v636, 32
    %v649 = vpop.permute.xlu0 %648
    %v654 = vunpack.c.l.b16 %v640
    %v655 = vunpack.c.h.b16 %v640
    %v656 = vunpack.c.l.b16 %v641
    %v657 = vunpack.c.h.b16 %v641
    %v658 = vunpack.c.l.b16 %v642
    %v659 = vunpack.c.h.b16 %v642
    %v660 = vunpack.c.l.b16 %v643
    %v661 = vunpack.c.h.b16 %v643
    %v662 = vpack.c.b16 %v656, %v654
    %v663 = vpack.c.b16 %v657, %v655
    %v664 = vpack.c.b16 %v660, %v658
    %v665 = vpack.c.b16 %v661, %v659
    %v671 = vlaneseq
    %v672 = vshrl.u32 %v671, 7
    %v673 = vsub.s32 0, %v672
    %v674 = vrot.slane %v646, %v673
    %v675 = vlaneseq
    %v676 = vshrl.u32 %v675, 7
    %v677 = vsub.s32 1, %v676
    %v678 = vrot.slane %v646, %v677
    %v682 = vsel %vm135, %v649, 0
    %684 = vmatprep.subr.bf16.mxu0 %v663
    %685 = vmatpush1.bf16.msra.mxu0 %v662
    %686 = vmatprep.subr.bf16.mxu0 %v665
    %687 = vmatpush1.bf16.msra.mxu0 %v664
    %688 = vmatprep.subr.bf16.mxu0 0
    %689 = vmatpush1.bf16.msra.mxu0 0
    %690 = vmatprep.subr.bf16.mxu0 0
    %691 = vmatpush1.bf16.msra.mxu0 0
    %692 = vmatprep.subr.bf16.mxu0 0
    %693 = vmatpush1.bf16.msra.mxu0 0
    %694 = vmatprep.subr.bf16.mxu0 0
    %695 = vmatpush1.bf16.msra.mxu0 0
    %696 = vmatprep.subr.bf16.mxu0 0
    %697 = vmatpush1.bf16.msra.mxu0 0
    %698 = vmatprep.subr.bf16.mxu0 0
    %699 = vmatpush1.bf16.msra.mxu0 0
    %700 = vmatprep.subr.bf16.mxu0 0
    %701 = vmatpush1.bf16.msra.mxu0 0
    %702 = vmatprep.subr.bf16.mxu0 0
    %703 = vmatpush1.bf16.msra.mxu0 0
    %704 = vmatprep.subr.bf16.mxu0 0
    %705 = vmatpush1.bf16.msra.mxu0 0
    %706 = vmatprep.subr.bf16.mxu0 0
    %707 = vmatpush1.bf16.msra.mxu0 0
    %708 = vmatprep.subr.bf16.mxu0 0
    %709 = vmatpush1.bf16.msra.mxu0 0
    %710 = vmatprep.subr.bf16.mxu0 0
    %711 = vmatpush1.bf16.msra.mxu0 0
    %712 = vmatprep.subr.bf16.mxu0 0
    %713 = vmatpush1.bf16.msra.mxu0 0
    %714 = vmatprep.subr.bf16.mxu0 0
    %715 = vmatpush1.bf16.msra.mxu0 0
    %716 = vmatprep.mubr.bf16.mxu0 0
    %717 = vmatmul.mubr.bf16.gmra.mrb[0].mxu0 %v682
    %v718 = vpop.f32.mrb[0].mxu0
    %v719 = vadd.f32 %v674, %v718
    %v720 = vpop.f32.mrb[0].mxu0
    %v721 = vadd.f32 %v678, %v720
    %v722 = vpop.f32.mrb[0].mxu0
    %v723 = vpop.f32.mrb[0].mxu0
    %724 = vdwg.mxu0
    %v725 = vsel %vm58, %v719, -inf
    %726 = vmax.xlane.f32.xlu0 %v725
    %v727 = vpop.xlane.xlu0 %726
    %v728 = vsub.f32 %v719, %v727
    %v729 = vmul.f32 %v728, 1.442695
    %v730 = vpow.pop %v729
    %v731 = vsel %vm58, %v730, 0.0
    %732 = vadd.xlane.f32.xlu0 %v731
    %v733 = vpop.xlane.xlu0 %732
    %v734 = vrcp.pop %v733
    %v735 = vmul.f32 %v730, %v734
    %vm736 = vcmp.eq.f32.partialorder %v719, %v727
    %v737 = vsel %vm736, %v37, 128
    %v738 = vsel %vm58, %v737, 2147483647
    %v739 = vand.u32 %v738, 65535
    %v740 = vshra.s32 %v738, 16
    %v741 = vcvt.s32.f32 %v739
    %v742 = vcvt.s32.f32 %v740
    %743 = vmin.xlane.f32.xlu0 %v742
    %v744 = vpop.xlane.xlu0 %743
    %vm745 = vcmp.eq.f32.partialorder %v742, %v744
    %v746 = vsel %vm745, %v741, inf
    %747 = vmin.xlane.f32.xlu0 %v746
    %v748 = vpop.xlane.xlu0 %747
    %v749 = vcvt.f32.s32 %v748
    %v750 = vcvt.f32.s32 %v744
    %v751 = vshll.u32 %v750, 16
    %v752 = vadd.s32 %v751, %v749
    %vm753 = vcmp.eq.s32.totalorder %v37, %v752
    %v754 = vsel %vm753, 1, 0
    %v755 = vcvt.s32.f32 %v754
    %v756 = vmul.f32 %v721, %v755
    %v757 = vsel %vm58, %v756, 0.0
    %758 = vadd.xlane.f32.xlu0 %v757
    %v759 = vpop.xlane.xlu0 %758
    %v760 = vstv %s586
    %vm761 = vcmp.eq.s32.totalorder %v37, %v760
    %v762 = vsel %vm761, %v759, %v581
    %v763 = vsel %vm218, %v759, %v735
    %v764 = vcvt.s32.f32 %v752
    %v765 = vsel %vm220, %v764, %v763
    %766 = vst [vmem:[#allocation6 + $0x3] sm:$0x1] %v765
    %s767 = sadd.s32 %s39, 4
    %s768 = sld [smem:[#allocation4 + %s767]]
    %s769 = smul.u32 %s767, 2
    %s770 = sld [smem:[#allocation5 + %s769]]
    %v771 = vstv %s770
    %vm772 = vcmp.eq.s32.totalorder %v37, %v771
    %v773 = vsel %vm772, 1, 0
    %v774 = vcvt.s32.f32 %v773
    %s775 = sadd.s32 %s769, 1
    %s776 = sld [smem:[#allocation5 + %s775]]
    %v777 = vstv %s776
    %vm778 = vcmp.eq.s32.totalorder %v37, %v777
    %v779 = vsel %vm778, 1, 0
    %v780 = vcvt.s32.f32 %v779
    %v781 = vadd.f32 %v774, %v780
    %782 = vadd.xlane.f32.xlu0 %v781
    %v783 = vpop.xlane.xlu0 %782
    %vm784 = vcmp.gt.f32.partialorder %v783, 0.0
    %v785 = vmul.f32 %v762, %v781
    %v786 = vsel %vm58, %v785, 0.0
    %787 = vadd.xlane.f32.xlu0 %v786
    %v788 = vpop.xlane.xlu0 %787
    %v789 = vmax.f32 %v783, 1.0
    %v790 = vrcp.pop %v789
    %v791 = vmul.f32 %v788, %v790
    %v792 = vsel %vm784, %v791, 0.0
    %s793 = scalar_lea.vmem %s2, %s768
    %v794 = vld [vmem:[%s793] sm:$0x1]
    %s795 = scalar_lea.vmem %s3, %s768
    %v796 = vld [vmem:[%s795] sm:$0x1]
    %v797 = vmul.f32 %v792, %v796
    %v798 = vadd.f32 %v794, %v797
    %v799 = vxor.u32 %v798, 2147483648
    %v800 = vmul.f32 %v799, 1.442695
    %v801 = vpow.pop %v800
    %v802 = vadd.f32 %v801, 1.0
    %v803 = vrcp.pop %v802
    %v804 = vmul.f32 1.0, %v803
    %v805 = vtanh.pop %v798
    %807 = vrot.lane.b32.xlu0 %v805, 64
    %v808 = vpop.permute.xlu0 %807
    %v810 = vmul.f32 %v804, %v808
    %v811 = vtanh.pop %v810
    %813 = vrot.lane.b32.xlu0 %v811, 96
    %v814 = vpop.permute.xlu0 %813
    %v816 = vmul.f32 %v804, %v814
    %v817 = vpack.c.bf16 %v816, %v816
    %s818 = smul.u32 %s768, 8
    %s819 = smul.addr %s818, 4
    %s820 = scalar_lea.vmem %s5, %s819
    %v821 = vld [vmem:[%s820] sm:$0xff]
    %v822 = vld [vmem:[%s820 + $0x8] sm:$0xff]
    %v823 = vld [vmem:[%s820 + $0x10] sm:$0xff]
    %v824 = vld [vmem:[%s820 + $0x18] sm:$0xff]
    %s825 = smul.u32 %s768, 2
    %s826 = scalar_lea.vmem %s4, %s825
    %v827 = vld [vmem:[%s826] sm:$0x3]
    %829 = vrot.lane.b32.xlu0 %v817, 32
    %v830 = vpop.permute.xlu0 %829
    %v835 = vunpack.c.l.b16 %v821
    %v836 = vunpack.c.h.b16 %v821
    %v837 = vunpack.c.l.b16 %v822
    %v838 = vunpack.c.h.b16 %v822
    %v839 = vunpack.c.l.b16 %v823
    %v840 = vunpack.c.h.b16 %v823
    %v841 = vunpack.c.l.b16 %v824
    %v842 = vunpack.c.h.b16 %v824
    %v843 = vpack.c.b16 %v837, %v835
    %v844 = vpack.c.b16 %v838, %v836
    %v845 = vpack.c.b16 %v841, %v839
    %v846 = vpack.c.b16 %v842, %v840
    %v852 = vlaneseq
    %v853 = vshrl.u32 %v852, 7
    %v854 = vsub.s32 0, %v853
    %v855 = vrot.slane %v827, %v854
    %v856 = vlaneseq
    %v857 = vshrl.u32 %v856, 7
    %v858 = vsub.s32 1, %v857
    %v859 = vrot.slane %v827, %v858
    %v863 = vsel %vm135, %v830, 0
    %865 = vmatprep.subr.bf16.mxu0 %v844
    %866 = vmatpush1.bf16.msra.mxu0 %v843
    %867 = vmatprep.subr.bf16.mxu0 %v846
    %868 = vmatpush1.bf16.msra.mxu0 %v845
    %869 = vmatprep.subr.bf16.mxu0 0
    %870 = vmatpush1.bf16.msra.mxu0 0
    %871 = vmatprep.subr.bf16.mxu0 0
    %872 = vmatpush1.bf16.msra.mxu0 0
    %873 = vmatprep.subr.bf16.mxu0 0
    %874 = vmatpush1.bf16.msra.mxu0 0
    %875 = vmatprep.subr.bf16.mxu0 0
    %876 = vmatpush1.bf16.msra.mxu0 0
    %877 = vmatprep.subr.bf16.mxu0 0
    %878 = vmatpush1.bf16.msra.mxu0 0
    %879 = vmatprep.subr.bf16.mxu0 0
    %880 = vmatpush1.bf16.msra.mxu0 0
    %881 = vmatprep.subr.bf16.mxu0 0
    %882 = vmatpush1.bf16.msra.mxu0 0
    %883 = vmatprep.subr.bf16.mxu0 0
    %884 = vmatpush1.bf16.msra.mxu0 0
    %885 = vmatprep.subr.bf16.mxu0 0
    %886 = vmatpush1.bf16.msra.mxu0 0
    %887 = vmatprep.subr.bf16.mxu0 0
    %888 = vmatpush1.bf16.msra.mxu0 0
    %889 = vmatprep.subr.bf16.mxu0 0
    %890 = vmatpush1.bf16.msra.mxu0 0
    %891 = vmatprep.subr.bf16.mxu0 0
    %892 = vmatpush1.bf16.msra.mxu0 0
    %893 = vmatprep.subr.bf16.mxu0 0
    %894 = vmatpush1.bf16.msra.mxu0 0
    %895 = vmatprep.subr.bf16.mxu0 0
    %896 = vmatpush1.bf16.msra.mxu0 0
    %897 = vmatprep.mubr.bf16.mxu0 0
    %898 = vmatmul.mubr.bf16.gmra.mrb[0].mxu0 %v863
    %v899 = vpop.f32.mrb[0].mxu0
    %v900 = vadd.f32 %v855, %v899
    %v901 = vpop.f32.mrb[0].mxu0
    %v902 = vadd.f32 %v859, %v901
    %v903 = vpop.f32.mrb[0].mxu0
    %v904 = vpop.f32.mrb[0].mxu0
    %905 = vdwg.mxu0
    %v906 = vsel %vm58, %v900, -inf
    %907 = vmax.xlane.f32.xlu0 %v906
    %v908 = vpop.xlane.xlu0 %907
    %v909 = vsub.f32 %v900, %v908
    %v910 = vmul.f32 %v909, 1.442695
    %v911 = vpow.pop %v910
    %v912 = vsel %vm58, %v911, 0.0
    %913 = vadd.xlane.f32.xlu0 %v912
    %v914 = vpop.xlane.xlu0 %913
    %v915 = vrcp.pop %v914
    %v916 = vmul.f32 %v911, %v915
    %vm917 = vcmp.eq.f32.partialorder %v900, %v908
    %v918 = vsel %vm917, %v37, 128
    %v919 = vsel %vm58, %v918, 2147483647
    %v920 = vand.u32 %v919, 65535
    %v921 = vshra.s32 %v919, 16
    %v922 = vcvt.s32.f32 %v920
    %v923 = vcvt.s32.f32 %v921
    %924 = vmin.xlane.f32.xlu0 %v923
    %v925 = vpop.xlane.xlu0 %924
    %vm926 = vcmp.eq.f32.partialorder %v923, %v925
    %v927 = vsel %vm926, %v922, inf
    %928 = vmin.xlane.f32.xlu0 %v927
    %v929 = vpop.xlane.xlu0 %928
    %v930 = vcvt.f32.s32 %v929
    %v931 = vcvt.f32.s32 %v925
    %v932 = vshll.u32 %v931, 16
    %v933 = vadd.s32 %v932, %v930
    %vm934 = vcmp.eq.s32.totalorder %v37, %v933
    %v935 = vsel %vm934, 1, 0
    %v936 = vcvt.s32.f32 %v935
    %v937 = vmul.f32 %v902, %v936
    %v938 = vsel %vm58, %v937, 0.0
    %939 = vadd.xlane.f32.xlu0 %v938
    %v940 = vpop.xlane.xlu0 %939
    %v941 = vstv %s767
    %vm942 = vcmp.eq.s32.totalorder %v37, %v941
    %v943 = vsel %vm942, %v940, %v762
    %v944 = vsel %vm218, %v940, %v916
    %v945 = vcvt.s32.f32 %v933
    %v946 = vsel %vm220, %v945, %v944
    %947 = vst [vmem:[#allocation6 + $0x4] sm:$0x1] %v946
    %s948 = sadd.s32 %s39, 5
    %s949 = sld [smem:[#allocation4 + %s948]]
    %s950 = smul.u32 %s948, 2
    %s951 = sld [smem:[#allocation5 + %s950]]
    %v952 = vstv %s951
    %vm953 = vcmp.eq.s32.totalorder %v37, %v952
    %v954 = vsel %vm953, 1, 0
    %v955 = vcvt.s32.f32 %v954
    %s956 = sadd.s32 %s950, 1
    %s957 = sld [smem:[#allocation5 + %s956]]
    %v958 = vstv %s957
    %vm959 = vcmp.eq.s32.totalorder %v37, %v958
    %v960 = vsel %vm959, 1, 0
    %v961 = vcvt.s32.f32 %v960
    %v962 = vadd.f32 %v955, %v961
    %963 = vadd.xlane.f32.xlu0 %v962
    %v964 = vpop.xlane.xlu0 %963
    %vm965 = vcmp.gt.f32.partialorder %v964, 0.0
    %v966 = vmul.f32 %v943, %v962
    %v967 = vsel %vm58, %v966, 0.0
    %968 = vadd.xlane.f32.xlu0 %v967
    %v969 = vpop.xlane.xlu0 %968
    %v970 = vmax.f32 %v964, 1.0
    %v971 = vrcp.pop %v970
    %v972 = vmul.f32 %v969, %v971
    %v973 = vsel %vm965, %v972, 0.0
    %s974 = scalar_lea.vmem %s2, %s949
    %v975 = vld [vmem:[%s974] sm:$0x1]
    %s976 = scalar_lea.vmem %s3, %s949
    %v977 = vld [vmem:[%s976] sm:$0x1]
    %v978 = vmul.f32 %v973, %v977
    %v979 = vadd.f32 %v975, %v978
    %v980 = vxor.u32 %v979, 2147483648
    %v981 = vmul.f32 %v980, 1.442695
    %v982 = vpow.pop %v981
    %v983 = vadd.f32 %v982, 1.0
    %v984 = vrcp.pop %v983
    %v985 = vmul.f32 1.0, %v984
    %v986 = vtanh.pop %v979
    %988 = vrot.lane.b32.xlu0 %v986, 64
    %v989 = vpop.permute.xlu0 %988
    %v991 = vmul.f32 %v985, %v989
    %v992 = vtanh.pop %v991
    %994 = vrot.lane.b32.xlu0 %v992, 96
    %v995 = vpop.permute.xlu0 %994
    %v997 = vmul.f32 %v985, %v995
    %v998 = vpack.c.bf16 %v997, %v997
    %s999 = smul.u32 %s949, 8
    %s1000 = smul.addr %s999, 4
    %s1001 = scalar_lea.vmem %s5, %s1000
    %v1002 = vld [vmem:[%s1001] sm:$0xff]
    %v1003 = vld [vmem:[%s1001 + $0x8] sm:$0xff]
    %v1004 = vld [vmem:[%s1001 + $0x10] sm:$0xff]
    %v1005 = vld [vmem:[%s1001 + $0x18] sm:$0xff]
    %s1006 = smul.u32 %s949, 2
    %s1007 = scalar_lea.vmem %s4, %s1006
    %v1008 = vld [vmem:[%s1007] sm:$0x3]
    %1010 = vrot.lane.b32.xlu0 %v998, 32
    %v1011 = vpop.permute.xlu0 %1010
    %v1016 = vunpack.c.l.b16 %v1002
    %v1017 = vunpack.c.h.b16 %v1002
    %v1018 = vunpack.c.l.b16 %v1003
    %v1019 = vunpack.c.h.b16 %v1003
    %v1020 = vunpack.c.l.b16 %v1004
    %v1021 = vunpack.c.h.b16 %v1004
    %v1022 = vunpack.c.l.b16 %v1005
    %v1023 = vunpack.c.h.b16 %v1005
    %v1024 = vpack.c.b16 %v1018, %v1016
    %v1025 = vpack.c.b16 %v1019, %v1017
    %v1026 = vpack.c.b16 %v1022, %v1020
    %v1027 = vpack.c.b16 %v1023, %v1021
    %v1033 = vlaneseq
    %v1034 = vshrl.u32 %v1033, 7
    %v1035 = vsub.s32 0, %v1034
    %v1036 = vrot.slane %v1008, %v1035
    %v1037 = vlaneseq
    %v1038 = vshrl.u32 %v1037, 7
    %v1039 = vsub.s32 1, %v1038
    %v1040 = vrot.slane %v1008, %v1039
    %v1044 = vsel %vm135, %v1011, 0
    %1046 = vmatprep.subr.bf16.mxu0 %v1025
    %1047 = vmatpush1.bf16.msra.mxu0 %v1024
    %1048 = vmatprep.subr.bf16.mxu0 %v1027
    %1049 = vmatpush1.bf16.msra.mxu0 %v1026
    %1050 = vmatprep.subr.bf16.mxu0 0
    %1051 = vmatpush1.bf16.msra.mxu0 0
    %1052 = vmatprep.subr.bf16.mxu0 0
    %1053 = vmatpush1.bf16.msra.mxu0 0
    %1054 = vmatprep.subr.bf16.mxu0 0
    %1055 = vmatpush1.bf16.msra.mxu0 0
    %1056 = vmatprep.subr.bf16.mxu0 0
    %1057 = vmatpush1.bf16.msra.mxu0 0
    %1058 = vmatprep.subr.bf16.mxu0 0
    %1059 = vmatpush1.bf16.msra.mxu0 0
    %1060 = vmatprep.subr.bf16.mxu0 0
    %1061 = vmatpush1.bf16.msra.mxu0 0
    %1062 = vmatprep.subr.bf16.mxu0 0
    %1063 = vmatpush1.bf16.msra.mxu0 0
    %1064 = vmatprep.subr.bf16.mxu0 0
    %1065 = vmatpush1.bf16.msra.mxu0 0
    %1066 = vmatprep.subr.bf16.mxu0 0
    %1067 = vmatpush1.bf16.msra.mxu0 0
    %1068 = vmatprep.subr.bf16.mxu0 0
    %1069 = vmatpush1.bf16.msra.mxu0 0
    %1070 = vmatprep.subr.bf16.mxu0 0
    %1071 = vmatpush1.bf16.msra.mxu0 0
    %1072 = vmatprep.subr.bf16.mxu0 0
    %1073 = vmatpush1.bf16.msra.mxu0 0
    %1074 = vmatprep.subr.bf16.mxu0 0
    %1075 = vmatpush1.bf16.msra.mxu0 0
    %1076 = vmatprep.subr.bf16.mxu0 0
    %1077 = vmatpush1.bf16.msra.mxu0 0
    %1078 = vmatprep.mubr.bf16.mxu0 0
    %1079 = vmatmul.mubr.bf16.gmra.mrb[0].mxu0 %v1044
    %v1080 = vpop.f32.mrb[0].mxu0
    %v1081 = vadd.f32 %v1036, %v1080
    %v1082 = vpop.f32.mrb[0].mxu0
    %v1083 = vadd.f32 %v1040, %v1082
    %v1084 = vpop.f32.mrb[0].mxu0
    %v1085 = vpop.f32.mrb[0].mxu0
    %1086 = vdwg.mxu0
    %v1087 = vsel %vm58, %v1081, -inf
    %1088 = vmax.xlane.f32.xlu0 %v1087
    %v1089 = vpop.xlane.xlu0 %1088
    %v1090 = vsub.f32 %v1081, %v1089
    %v1091 = vmul.f32 %v1090, 1.442695
    %v1092 = vpow.pop %v1091
    %v1093 = vsel %vm58, %v1092, 0.0
    %1094 = vadd.xlane.f32.xlu0 %v1093
    %v1095 = vpop.xlane.xlu0 %1094
    %v1096 = vrcp.pop %v1095
    %v1097 = vmul.f32 %v1092, %v1096
    %vm1098 = vcmp.eq.f32.partialorder %v1081, %v1089
    %v1099 = vsel %vm1098, %v37, 128
    %v1100 = vsel %vm58, %v1099, 2147483647
    %v1101 = vand.u32 %v1100, 65535
    %v1102 = vshra.s32 %v1100, 16
    %v1103 = vcvt.s32.f32 %v1101
    %v1104 = vcvt.s32.f32 %v1102
    %1105 = vmin.xlane.f32.xlu0 %v1104
    %v1106 = vpop.xlane.xlu0 %1105
    %vm1107 = vcmp.eq.f32.partialorder %v1104, %v1106
    %v1108 = vsel %vm1107, %v1103, inf
    %1109 = vmin.xlane.f32.xlu0 %v1108
    %v1110 = vpop.xlane.xlu0 %1109
    %v1111 = vcvt.f32.s32 %v1110
    %v1112 = vcvt.f32.s32 %v1106
    %v1113 = vshll.u32 %v1112, 16
    %v1114 = vadd.s32 %v1113, %v1111
    %vm1115 = vcmp.eq.s32.totalorder %v37, %v1114
    %v1116 = vsel %vm1115, 1, 0
    %v1117 = vcvt.s32.f32 %v1116
    %v1118 = vmul.f32 %v1083, %v1117
    %v1119 = vsel %vm58, %v1118, 0.0
    %1120 = vadd.xlane.f32.xlu0 %v1119
    %v1121 = vpop.xlane.xlu0 %1120
    %v1122 = vstv %s948
    %vm1123 = vcmp.eq.s32.totalorder %v37, %v1122
    %v1124 = vsel %vm1123, %v1121, %v943
    %v1125 = vsel %vm218, %v1121, %v1097
    %v1126 = vcvt.s32.f32 %v1114
    %v1127 = vsel %vm220, %v1126, %v1125
    %1128 = vst [vmem:[#allocation6 + $0x5] sm:$0x1] %v1127
    %s1129 = sadd.s32 %s39, 6
    %s1130 = sld [smem:[#allocation4 + %s1129]]
    %s1131 = smul.u32 %s1129, 2
    %s1132 = sld [smem:[#allocation5 + %s1131]]
    %v1133 = vstv %s1132
    %vm1134 = vcmp.eq.s32.totalorder %v37, %v1133
    %v1135 = vsel %vm1134, 1, 0
    %v1136 = vcvt.s32.f32 %v1135
    %s1137 = sadd.s32 %s1131, 1
    %s1138 = sld [smem:[#allocation5 + %s1137]]
    %v1139 = vstv %s1138
    %vm1140 = vcmp.eq.s32.totalorder %v37, %v1139
    %v1141 = vsel %vm1140, 1, 0
    %v1142 = vcvt.s32.f32 %v1141
    %v1143 = vadd.f32 %v1136, %v1142
    %1144 = vadd.xlane.f32.xlu0 %v1143
    %v1145 = vpop.xlane.xlu0 %1144
    %vm1146 = vcmp.gt.f32.partialorder %v1145, 0.0
    %v1147 = vmul.f32 %v1124, %v1143
    %v1148 = vsel %vm58, %v1147, 0.0
    %1149 = vadd.xlane.f32.xlu0 %v1148
    %v1150 = vpop.xlane.xlu0 %1149
    %v1151 = vmax.f32 %v1145, 1.0
    %v1152 = vrcp.pop %v1151
    %v1153 = vmul.f32 %v1150, %v1152
    %v1154 = vsel %vm1146, %v1153, 0.0
    %s1155 = scalar_lea.vmem %s2, %s1130
    %v1156 = vld [vmem:[%s1155] sm:$0x1]
    %s1157 = scalar_lea.vmem %s3, %s1130
    %v1158 = vld [vmem:[%s1157] sm:$0x1]
    %v1159 = vmul.f32 %v1154, %v1158
    %v1160 = vadd.f32 %v1156, %v1159
    %v1161 = vxor.u32 %v1160, 2147483648
    %v1162 = vmul.f32 %v1161, 1.442695
    %v1163 = vpow.pop %v1162
    %v1164 = vadd.f32 %v1163, 1.0
    %v1165 = vrcp.pop %v1164
    %v1166 = vmul.f32 1.0, %v1165
    %v1167 = vtanh.pop %v1160
    %1169 = vrot.lane.b32.xlu0 %v1167, 64
    %v1170 = vpop.permute.xlu0 %1169
    %v1172 = vmul.f32 %v1166, %v1170
    %v1173 = vtanh.pop %v1172
    %1175 = vrot.lane.b32.xlu0 %v1173, 96
    %v1176 = vpop.permute.xlu0 %1175
    %v1178 = vmul.f32 %v1166, %v1176
    %v1179 = vpack.c.bf16 %v1178, %v1178
    %s1180 = smul.u32 %s1130, 8
    %s1181 = smul.addr %s1180, 4
    %s1182 = scalar_lea.vmem %s5, %s1181
    %v1183 = vld [vmem:[%s1182] sm:$0xff]
    %v1184 = vld [vmem:[%s1182 + $0x8] sm:$0xff]
    %v1185 = vld [vmem:[%s1182 + $0x10] sm:$0xff]
    %v1186 = vld [vmem:[%s1182 + $0x18] sm:$0xff]
    %s1187 = smul.u32 %s1130, 2
    %s1188 = scalar_lea.vmem %s4, %s1187
    %v1189 = vld [vmem:[%s1188] sm:$0x3]
    %1191 = vrot.lane.b32.xlu0 %v1179, 32
    %v1192 = vpop.permute.xlu0 %1191
    %v1197 = vunpack.c.l.b16 %v1183
    %v1198 = vunpack.c.h.b16 %v1183
    %v1199 = vunpack.c.l.b16 %v1184
    %v1200 = vunpack.c.h.b16 %v1184
    %v1201 = vunpack.c.l.b16 %v1185
    %v1202 = vunpack.c.h.b16 %v1185
    %v1203 = vunpack.c.l.b16 %v1186
    %v1204 = vunpack.c.h.b16 %v1186
    %v1205 = vpack.c.b16 %v1199, %v1197
    %v1206 = vpack.c.b16 %v1200, %v1198
    %v1207 = vpack.c.b16 %v1203, %v1201
    %v1208 = vpack.c.b16 %v1204, %v1202
    %v1214 = vlaneseq
    %v1215 = vshrl.u32 %v1214, 7
    %v1216 = vsub.s32 0, %v1215
    %v1217 = vrot.slane %v1189, %v1216
    %v1218 = vlaneseq
    %v1219 = vshrl.u32 %v1218, 7
    %v1220 = vsub.s32 1, %v1219
    %v1221 = vrot.slane %v1189, %v1220
    %v1225 = vsel %vm135, %v1192, 0
    %1227 = vmatprep.subr.bf16.mxu0 %v1206
    %1228 = vmatpush1.bf16.msra.mxu0 %v1205
    %1229 = vmatprep.subr.bf16.mxu0 %v1208
    %1230 = vmatpush1.bf16.msra.mxu0 %v1207
    %1231 = vmatprep.subr.bf16.mxu0 0
    %1232 = vmatpush1.bf16.msra.mxu0 0
    %1233 = vmatprep.subr.bf16.mxu0 0
    %1234 = vmatpush1.bf16.msra.mxu0 0
    %1235 = vmatprep.subr.bf16.mxu0 0
    %1236 = vmatpush1.bf16.msra.mxu0 0
    %1237 = vmatprep.subr.bf16.mxu0 0
    %1238 = vmatpush1.bf16.msra.mxu0 0
    %1239 = vmatprep.subr.bf16.mxu0 0
    %1240 = vmatpush1.bf16.msra.mxu0 0
    %1241 = vmatprep.subr.bf16.mxu0 0
    %1242 = vmatpush1.bf16.msra.mxu0 0
    %1243 = vmatprep.subr.bf16.mxu0 0
    %1244 = vmatpush1.bf16.msra.mxu0 0
    %1245 = vmatprep.subr.bf16.mxu0 0
    %1246 = vmatpush1.bf16.msra.mxu0 0
    %1247 = vmatprep.subr.bf16.mxu0 0
    %1248 = vmatpush1.bf16.msra.mxu0 0
    %1249 = vmatprep.subr.bf16.mxu0 0
    %1250 = vmatpush1.bf16.msra.mxu0 0
    %1251 = vmatprep.subr.bf16.mxu0 0
    %1252 = vmatpush1.bf16.msra.mxu0 0
    %1253 = vmatprep.subr.bf16.mxu0 0
    %1254 = vmatpush1.bf16.msra.mxu0 0
    %1255 = vmatprep.subr.bf16.mxu0 0
    %1256 = vmatpush1.bf16.msra.mxu0 0
    %1257 = vmatprep.subr.bf16.mxu0 0
    %1258 = vmatpush1.bf16.msra.mxu0 0
    %1259 = vmatprep.mubr.bf16.mxu0 0
    %1260 = vmatmul.mubr.bf16.gmra.mrb[0].mxu0 %v1225
    %v1261 = vpop.f32.mrb[0].mxu0
    %v1262 = vadd.f32 %v1217, %v1261
    %v1263 = vpop.f32.mrb[0].mxu0
    %v1264 = vadd.f32 %v1221, %v1263
    %v1265 = vpop.f32.mrb[0].mxu0
    %v1266 = vpop.f32.mrb[0].mxu0
    %1267 = vdwg.mxu0
    %v1268 = vsel %vm58, %v1262, -inf
    %1269 = vmax.xlane.f32.xlu0 %v1268
    %v1270 = vpop.xlane.xlu0 %1269
    %v1271 = vsub.f32 %v1262, %v1270
    %v1272 = vmul.f32 %v1271, 1.442695
    %v1273 = vpow.pop %v1272
    %v1274 = vsel %vm58, %v1273, 0.0
    %1275 = vadd.xlane.f32.xlu0 %v1274
    %v1276 = vpop.xlane.xlu0 %1275
    %v1277 = vrcp.pop %v1276
    %v1278 = vmul.f32 %v1273, %v1277
    %vm1279 = vcmp.eq.f32.partialorder %v1262, %v1270
    %v1280 = vsel %vm1279, %v37, 128
    %v1281 = vsel %vm58, %v1280, 2147483647
    %v1282 = vand.u32 %v1281, 65535
    %v1283 = vshra.s32 %v1281, 16
    %v1284 = vcvt.s32.f32 %v1282
    %v1285 = vcvt.s32.f32 %v1283
    %1286 = vmin.xlane.f32.xlu0 %v1285
    %v1287 = vpop.xlane.xlu0 %1286
    %vm1288 = vcmp.eq.f32.partialorder %v1285, %v1287
    %v1289 = vsel %vm1288, %v1284, inf
    %1290 = vmin.xlane.f32.xlu0 %v1289
    %v1291 = vpop.xlane.xlu0 %1290
    %v1292 = vcvt.f32.s32 %v1291
    %v1293 = vcvt.f32.s32 %v1287
    %v1294 = vshll.u32 %v1293, 16
    %v1295 = vadd.s32 %v1294, %v1292
    %vm1296 = vcmp.eq.s32.totalorder %v37, %v1295
    %v1297 = vsel %vm1296, 1, 0
    %v1298 = vcvt.s32.f32 %v1297
    %v1299 = vmul.f32 %v1264, %v1298
    %v1300 = vsel %vm58, %v1299, 0.0
    %1301 = vadd.xlane.f32.xlu0 %v1300
    %v1302 = vpop.xlane.xlu0 %1301
    %v1303 = vstv %s1129
    %vm1304 = vcmp.eq.s32.totalorder %v37, %v1303
    %v1305 = vsel %vm1304, %v1302, %v1124
    %v1306 = vsel %vm218, %v1302, %v1278
    %v1307 = vcvt.s32.f32 %v1295
    %v1308 = vsel %vm220, %v1307, %v1306
    %1309 = vst [vmem:[#allocation6 + $0x6] sm:$0x1] %v1308
    %s1310 = sadd.s32 %s39, 7
    %s1311 = sld [smem:[#allocation4 + %s1310]]
    %s1312 = smul.u32 %s1310, 2
    %s1313 = sld [smem:[#allocation5 + %s1312]]
    %v1314 = vstv %s1313
    %vm1315 = vcmp.eq.s32.totalorder %v37, %v1314
    %v1316 = vsel %vm1315, 1, 0
    %v1317 = vcvt.s32.f32 %v1316
    %s1318 = sadd.s32 %s1312, 1
    %s1319 = sld [smem:[#allocation5 + %s1318]]
    %v1320 = vstv %s1319
    %vm1321 = vcmp.eq.s32.totalorder %v37, %v1320
    %v1322 = vsel %vm1321, 1, 0
    %v1323 = vcvt.s32.f32 %v1322
    %v1324 = vadd.f32 %v1317, %v1323
    %1325 = vadd.xlane.f32.xlu0 %v1324
    %v1326 = vpop.xlane.xlu0 %1325
    %vm1327 = vcmp.gt.f32.partialorder %v1326, 0.0
    %v1328 = vmul.f32 %v1305, %v1324
    %v1329 = vsel %vm58, %v1328, 0.0
    %1330 = vadd.xlane.f32.xlu0 %v1329
    %v1331 = vpop.xlane.xlu0 %1330
    %v1332 = vmax.f32 %v1326, 1.0
    %v1333 = vrcp.pop %v1332
    %v1334 = vmul.f32 %v1331, %v1333
    %v1335 = vsel %vm1327, %v1334, 0.0
    %s1336 = scalar_lea.vmem %s2, %s1311
    %v1337 = vld [vmem:[%s1336] sm:$0x1]
    %s1338 = scalar_lea.vmem %s3, %s1311
    %v1339 = vld [vmem:[%s1338] sm:$0x1]
    %v1340 = vmul.f32 %v1335, %v1339
    %v1341 = vadd.f32 %v1337, %v1340
    %v1342 = vxor.u32 %v1341, 2147483648
    %v1343 = vmul.f32 %v1342, 1.442695
    %v1344 = vpow.pop %v1343
    %v1345 = vadd.f32 %v1344, 1.0
    %v1346 = vrcp.pop %v1345
    %v1347 = vmul.f32 1.0, %v1346
    %v1348 = vtanh.pop %v1341
    %1350 = vrot.lane.b32.xlu0 %v1348, 64
    %v1351 = vpop.permute.xlu0 %1350
    %v1353 = vmul.f32 %v1347, %v1351
    %v1354 = vtanh.pop %v1353
    %1356 = vrot.lane.b32.xlu0 %v1354, 96
    %v1357 = vpop.permute.xlu0 %1356
    %v1359 = vmul.f32 %v1347, %v1357
    %v1360 = vpack.c.bf16 %v1359, %v1359
    %s1361 = smul.u32 %s1311, 8
    %s1362 = smul.addr %s1361, 4
    %s1363 = scalar_lea.vmem %s5, %s1362
    %v1364 = vld [vmem:[%s1363] sm:$0xff]
    %v1365 = vld [vmem:[%s1363 + $0x8] sm:$0xff]
    %v1366 = vld [vmem:[%s1363 + $0x10] sm:$0xff]
    %v1367 = vld [vmem:[%s1363 + $0x18] sm:$0xff]
    %s1368 = smul.u32 %s1311, 2
    %s1369 = scalar_lea.vmem %s4, %s1368
    %v1370 = vld [vmem:[%s1369] sm:$0x3]
    %1372 = vrot.lane.b32.xlu0 %v1360, 32
    %v1373 = vpop.permute.xlu0 %1372
    %v1378 = vunpack.c.l.b16 %v1364
    %v1379 = vunpack.c.h.b16 %v1364
    %v1380 = vunpack.c.l.b16 %v1365
    %v1381 = vunpack.c.h.b16 %v1365
    %v1382 = vunpack.c.l.b16 %v1366
    %v1383 = vunpack.c.h.b16 %v1366
    %v1384 = vunpack.c.l.b16 %v1367
    %v1385 = vunpack.c.h.b16 %v1367
    %v1386 = vpack.c.b16 %v1380, %v1378
    %v1387 = vpack.c.b16 %v1381, %v1379
    %v1388 = vpack.c.b16 %v1384, %v1382
    %v1389 = vpack.c.b16 %v1385, %v1383
    %v1395 = vlaneseq
    %v1396 = vshrl.u32 %v1395, 7
    %v1397 = vsub.s32 0, %v1396
    %v1398 = vrot.slane %v1370, %v1397
    %v1399 = vlaneseq
    %v1400 = vshrl.u32 %v1399, 7
    %v1401 = vsub.s32 1, %v1400
    %v1402 = vrot.slane %v1370, %v1401
    %v1406 = vsel %vm135, %v1373, 0
    %1408 = vmatprep.subr.bf16.mxu0 %v1387
    %1409 = vmatpush1.bf16.msra.mxu0 %v1386
    %1410 = vmatprep.subr.bf16.mxu0 %v1389
    %1411 = vmatpush1.bf16.msra.mxu0 %v1388
    %1412 = vmatprep.subr.bf16.mxu0 0
    %1413 = vmatpush1.bf16.msra.mxu0 0
    %1414 = vmatprep.subr.bf16.mxu0 0
    %1415 = vmatpush1.bf16.msra.mxu0 0
    %1416 = vmatprep.subr.bf16.mxu0 0
    %1417 = vmatpush1.bf16.msra.mxu0 0
    %1418 = vmatprep.subr.bf16.mxu0 0
    %1419 = vmatpush1.bf16.msra.mxu0 0
    %1420 = vmatprep.subr.bf16.mxu0 0
    %1421 = vmatpush1.bf16.msra.mxu0 0
    %1422 = vmatprep.subr.bf16.mxu0 0
    %1423 = vmatpush1.bf16.msra.mxu0 0
    %1424 = vmatprep.subr.bf16.mxu0 0
    %1425 = vmatpush1.bf16.msra.mxu0 0
    %1426 = vmatprep.subr.bf16.mxu0 0
    %1427 = vmatpush1.bf16.msra.mxu0 0
    %1428 = vmatprep.subr.bf16.mxu0 0
    %1429 = vmatpush1.bf16.msra.mxu0 0
    %1430 = vmatprep.subr.bf16.mxu0 0
    %1431 = vmatpush1.bf16.msra.mxu0 0
    %1432 = vmatprep.subr.bf16.mxu0 0
    %1433 = vmatpush1.bf16.msra.mxu0 0
    %1434 = vmatprep.subr.bf16.mxu0 0
    %1435 = vmatpush1.bf16.msra.mxu0 0
    %1436 = vmatprep.subr.bf16.mxu0 0
    %1437 = vmatpush1.bf16.msra.mxu0 0
    %1438 = vmatprep.subr.bf16.mxu0 0
    %1439 = vmatpush1.bf16.msra.mxu0 0
    %1440 = vmatprep.mubr.bf16.mxu0 0
    %1441 = vmatmul.mubr.bf16.gmra.mrb[0].mxu0 %v1406
    %v1442 = vpop.f32.mrb[0].mxu0
    %v1443 = vadd.f32 %v1398, %v1442
    %v1444 = vpop.f32.mrb[0].mxu0
    %v1445 = vadd.f32 %v1402, %v1444
    %v1446 = vpop.f32.mrb[0].mxu0
    %v1447 = vpop.f32.mrb[0].mxu0
    %1448 = vdwg.mxu0
    %v1449 = vsel %vm58, %v1443, -inf
    %1450 = vmax.xlane.f32.xlu0 %v1449
    %v1451 = vpop.xlane.xlu0 %1450
    %v1452 = vsub.f32 %v1443, %v1451
    %v1453 = vmul.f32 %v1452, 1.442695
    %v1454 = vpow.pop %v1453
    %v1455 = vsel %vm58, %v1454, 0.0
    %1456 = vadd.xlane.f32.xlu0 %v1455
    %v1457 = vpop.xlane.xlu0 %1456
    %v1458 = vrcp.pop %v1457
    %v1459 = vmul.f32 %v1454, %v1458
    %vm1460 = vcmp.eq.f32.partialorder %v1443, %v1451
    %v1461 = vsel %vm1460, %v37, 128
    %v1462 = vsel %vm58, %v1461, 2147483647
    %v1463 = vand.u32 %v1462, 65535
    %v1464 = vshra.s32 %v1462, 16
    %v1465 = vcvt.s32.f32 %v1463
    %v1466 = vcvt.s32.f32 %v1464
    %1467 = vmin.xlane.f32.xlu0 %v1466
    %v1468 = vpop.xlane.xlu0 %1467
    %vm1469 = vcmp.eq.f32.partialorder %v1466, %v1468
    %v1470 = vsel %vm1469, %v1465, inf
    %1471 = vmin.xlane.f32.xlu0 %v1470
    %v1472 = vpop.xlane.xlu0 %1471
    %v1473 = vcvt.f32.s32 %v1472
    %v1474 = vcvt.f32.s32 %v1468
    %v1475 = vshll.u32 %v1474, 16
    %v1476 = vadd.s32 %v1475, %v1473
    %vm1477 = vcmp.eq.s32.totalorder %v37, %v1476
    %v1478 = vsel %vm1477, 1, 0
    %v1479 = vcvt.s32.f32 %v1478
    %v1480 = vmul.f32 %v1445, %v1479
    %v1481 = vsel %vm58, %v1480, 0.0
    %1482 = vadd.xlane.f32.xlu0 %v1481
    %v1483 = vpop.xlane.xlu0 %1482
    %v1484 = vstv %s1310
    %vm1485 = vcmp.eq.s32.totalorder %v37, %v1484
    %v1486 = vsel %vm1485, %v1483, %v1305
    %v1487 = vsel %vm218, %v1483, %v1459
    %v1488 = vcvt.s32.f32 %v1476
    %v1489 = vsel %vm220, %v1488, %v1487
    %1490 = vst [vmem:[#allocation6 + $0x7] sm:$0x1] %v1489
    %1491 = vst [vmem:[#allocation2] sm:$0x1] %v1486
    // Predicated region
    $region22: #{_fused_tree_forward.1} parent=1 // pred_check
      _
    $region23: #{_fused_tree_forward.1} parent=1 // pred_check_branch
      %1493 = sbr.rel (0) target = $region25
    $region24: #{_fused_tree_forward.1} parent=1 // pred_region
      %s1495 = ssub.s32 128, 128
      %1496 = vsyncadd [#allocation7], %s1495
      %s1498 = sshll.u32 [#allocation6], 4
      %s1499 = int_to_ptr.vmem [resolvable:$true] %s1498
      %1501 = dma.vmem_to_hbm [thread:$0]  %s1499, 128, %s6, [#allocation7]
    $region25: #{_fused_tree_forward.1} parent=1 // pred_fallthru
      _
    // Predicated region
    $region26: #{_fused_tree_forward.1} parent=1 // pred_check
      _
    $region27: #{_fused_tree_forward.1} parent=1 // pred_check_branch
      %1503 = sbr.rel (0) target = $region29
    $region28: #{_fused_tree_forward.1} parent=1 // pred_region
      %1504 = dma.done [#allocation7], 128
    $region29: #{_fused_tree_forward.1} parent=1 // pred_fallthru
      _
    %1505 = vsyncpa [#allocation7], 1

</llo_original>
